<compile_context>
chip_gen: v5e
topology: v5e:2x2
jax: 0.10.0
libtpu: 0.0.40
codegen_flags: <defaults>
</compile_context>

<pallas_src>
import jax
import jax.numpy as jnp
from jax import lax
from jax.experimental import pallas as pl
from jax.experimental.pallas import tpu as pltpu


def decomposable_attention_kernel(
        a_ref, b_ref,
        w1f_ref, b1f_ref, w2f_ref, b2f_ref,
        w1ga_ref, w1gb_ref, b1g_ref, w2g_ref, b2g_ref,
        w1ha_ref, w1hb_ref, b1h_ref, w2h_ref, b2h_ref,
        wout_ref, bout_ref,
        out_ref):
    f32 = jnp.float32
    mdt = w1f_ref.dtype          # MXU operand dtype (bf16 on v5e/v6e/v7x, or f32)

    A = a_ref[...]               # (BB, Ta, E) mdt
    B = b_ref[...]               # (BB, Tb, E) mdt
    BB, Ta, E = A.shape
    Tb = B.shape[1]
    na, nb = BB * Ta, BB * Tb

    w1f = w1f_ref[...]; b1f = b1f_ref[...]
    w2f = w2f_ref[...]; b2f = b2f_ref[...]
    w1ga = w1ga_ref[...]; w1gb = w1gb_ref[...]; b1g = b1g_ref[...]
    w2g = w2g_ref[...]; b2g = b2g_ref[...]
    w1ha = w1ha_ref[...]; w1hb = w1hb_ref[...]; b1h = b1h_ref[...]
    w2h = w2h_ref[...]; b2h = b2h_ref[...]
    wout = wout_ref[...]; bout = bout_ref[...]

    def dot(x, w):               # MXU matmul: mdt operands, f32 accumulation
        return jnp.dot(x.astype(mdt), w, preferred_element_type=f32)

    def bdot(x, y, dims):        # per-example batched matmul on the MXU
        return lax.dot_general(x.astype(mdt), y.astype(mdt),
                               dimension_numbers=(dims, ((0,), (0,))),
                               preferred_element_type=f32)

    # ---- Attend: shared f MLP on the stacked A|B token rows (one matmul pair
    # instead of two; dropout == identity at inference). Cast hoisted once.
    AB = jnp.concatenate([A.reshape(na, E), B.reshape(nb, E)],
                         axis=0).astype(mdt)                             # (na+nb, E)
    h = jnp.maximum(dot(AB, w1f) + b1f, 0.0)
    f_AB = jnp.maximum(dot(h, w2f) + b2f, 0.0)                           # (na+nb, H) f32
    f_A = f_AB[:na].reshape(BB, Ta, -1)
    f_B = f_AB[na:].reshape(BB, Tb, -1)

    # per-example attention scores e[b] = f_A[b] @ f_B[b].T (batched, not
    # flattened -> no cross-example attention).
    e = bdot(f_A, f_B, ((2,), (2,)))                                     # (BB, Ta, Tb)

    # row softmax (over Tb) -> beta weights; column softmax (over Ta) -> alpha
    # weights. The column path never materializes e.T: the transpose is
    # absorbed into the dot_general contraction below.
    p_r = jnp.exp(e - jnp.max(e, axis=2, keepdims=True))
    w_r = p_r * pl.reciprocal(jnp.sum(p_r, axis=2, keepdims=True), approx=True)
    p_c = jnp.exp(e - jnp.max(e, axis=1, keepdims=True))
    w_c = p_c * pl.reciprocal(jnp.sum(p_c, axis=1, keepdims=True), approx=True)

    beta = bdot(w_r, B, ((2,), (1,)))                                    # (BB, Ta, E)
    alpha = bdot(w_c, A, ((1,), (1,)))                                   # (BB, Tb, E)

    # ---- Compare: g(cat([x, y], -1)) as split matmuls on the stacked rows.
    XY = jnp.concatenate([beta.reshape(na, E), alpha.reshape(nb, E)], axis=0)
    hg = jnp.maximum(dot(AB, w1ga) + dot(XY, w1gb) + b1g, 0.0)
    V = jnp.maximum(dot(hg, w2g) + b2g, 0.0)                             # (na+nb, H) f32

    # ---- Aggregate: per-example token sums, h MLP (split matmul), linear head.
    H = V.shape[-1]
    sA = jnp.sum(V[:na].reshape(BB, Ta, H), axis=1)                      # (BB, H)
    sB = jnp.sum(V[na:].reshape(BB, Tb, H), axis=1)                      # (BB, H)
    hh = jnp.maximum(dot(sA, w1ha) + dot(sB, w1hb) + b1h, 0.0)
    hh = jnp.maximum(dot(hh, w2h) + b2h, 0.0)
    out_ref[...] = dot(hh, wout) + bout                                  # (BB, 128) lane-dense


def decomposable_attention(A, B, params, *, block_batch=8,
                           mxu_dtype=jnp.bfloat16, out_lanes=128):
    """A, B: [batch, T, E] float32 embedded premises / hypotheses."""
    batch, Ta, E = A.shape
    _, Tb, _ = B.shape
    (w1f, b1f, w2f, b2f,
     w1g, b1g, w2g, b2g,
     w1h, b1h, w2h, b2h,
     wout, bout) = params
    H = w1f.shape[-1]
    num_outputs = wout.shape[-1]

    # --- batch folding: BB examples per grid step (pad batch up if needed;
    #     zero-padded examples are harmless and sliced off below).
    bb = max(1, block_batch)
    padded = pl.cdiv(batch, bb) * bb
    if padded != batch:
        A = jnp.pad(A, ((0, padded - batch), (0, 0), (0, 0)))
        B = jnp.pad(B, ((0, padded - batch), (0, 0), (0, 0)))

    # --- inputs in MXU dtype at the call boundary: halves the input DMA and
    #     is numerically identical to casting inside every matmul.
    A = A.astype(mxu_dtype)
    B = B.astype(mxu_dtype)

    # --- split the "concat" weights so the kernel needs no in-kernel slicing.
    w1g_a, w1g_b = w1g[:E], w1g[E:]
    w1h_a, w1h_b = w1h[:H], w1h[H:]

    # --- lane-pad the 3-way head to a dense 128-lane slab (unmasked stores).
    outp = max(out_lanes, num_outputs)
    wout_p = jnp.zeros((H, outp), wout.dtype).at[:, :num_outputs].set(wout)
    bout_p = jnp.zeros((1, outp), bout.dtype).at[:, :num_outputs].set(bout)

    # --- bf16 weight matrices at the call boundary; biases stay f32.
    cast = lambda w: w.astype(mxu_dtype)
    mats = (cast(w1f), b1f, cast(w2f), b2f,
            cast(w1g_a), cast(w1g_b), b1g, cast(w2g), b2g,
            cast(w1h_a), cast(w1h_b), b1h, cast(w2h), b2h,
            cast(wout_p), bout_p)

    def full_spec(arr):
        return pl.BlockSpec(arr.shape, lambda i, nd=arr.ndim: (0,) * nd)

    grid_spec = pltpu.PrefetchScalarGridSpec(
        num_scalar_prefetch=0,
        grid=(padded // bb,),
        in_specs=[
            pl.BlockSpec((bb, Ta, E), lambda i: (i, 0, 0)),
            pl.BlockSpec((bb, Tb, E), lambda i: (i, 0, 0)),
        ] + [full_spec(w) for w in mats],
        out_specs=pl.BlockSpec((bb, outp), lambda i: (i, 0)),
    )

    out = pl.pallas_call(
        decomposable_attention_kernel,
        out_shape=jax.ShapeDtypeStruct((padded, outp), jnp.float32),
        grid_spec=grid_spec,
        compiler_params=pltpu.CompilerParams(
            dimension_semantics=("parallel",)),
    )(A, B, *mats)

    # TODO(synk): if Ta/Tb/E ever grow past toy sizes or sequences carry real
    # padding, pad E/H toward 128 and mask padded tokens in softmax/token-sum.
    return out[:batch, :num_outputs]


def reference(A, B, params):
    (w1f, b1f, w2f, b2f,
     w1g, b1g, w2g, b2g,
     w1h, b1h, w2h, b2h,
     wout, bout) = params

    def mlp2(x, w1, b1, w2, b2):
        h = jnp.maximum(x @ w1 + b1, 0.0)
        return jnp.maximum(h @ w2 + b2, 0.0)

    f_A = mlp2(A, w1f, b1f, w2f, b2f)
    f_B = mlp2(B, w1f, b1f, w2f, b2f)
    e = jnp.einsum('bqh,bkh->bqk', f_A, f_B)
    beta = jnp.einsum('bqk,bke->bqe', jax.nn.softmax(e, axis=-1), B)
    alpha = jnp.einsum('bkq,bqe->bke',
                       jax.nn.softmax(jnp.swapaxes(e, 1, 2), axis=-1), A)
    V_A = mlp2(jnp.concatenate([A, beta], axis=-1), w1g, b1g, w2g, b2g)
    V_B = mlp2(jnp.concatenate([B, alpha], axis=-1), w1g, b1g, w2g, b2g)
    sA = V_A.sum(axis=1)
    sB = V_B.sum(axis=1)
    hh = mlp2(jnp.concatenate([sA, sB], axis=-1), w1h, b1h, w2h, b2h)
    return hh @ wout + bout


if __name__ == "__main__":
    # small, module-consistent shapes; batch folds into 2 grid steps of BB=8
    # (>= 2 steps keeps both v7x TensorCores busy).
    batch = 16
    num_tokens = 8        # fixed premise / hypothesis length
    vocab_size = 50
    embed_size = 32       # num_inputs_attend
    num_hiddens = 64
    num_outputs = 3

    key = jax.random.PRNGKey(0)
    keys = jax.random.split(key, 20)

    def init(k, shape, scale=0.1):
        return jax.random.normal(k, shape, dtype=jnp.float32) * scale

    emb  = init(keys[0], (vocab_size, embed_size), 1.0)
    w1f  = init(keys[1], (embed_size, num_hiddens));      b1f = init(keys[2], (1, num_hiddens))
    w2f  = init(keys[3], (num_hiddens, num_hiddens));     b2f = init(keys[4], (1, num_hiddens))
    w1g  = init(keys[5], (2 * embed_size, num_hiddens));  b1g = init(keys[6], (1, num_hiddens))
    w2g  = init(keys[7], (num_hiddens, num_hiddens));     b2g = init(keys[8], (1, num_hiddens))
    w1h  = init(keys[9], (2 * num_hiddens, num_hiddens)); b1h = init(keys[10], (1, num_hiddens))
    w2h  = init(keys[11], (num_hiddens, num_hiddens));    b2h = init(keys[12], (1, num_hiddens))
    wout = init(keys[13], (num_hiddens, num_outputs));    bout = init(keys[14], (1, num_outputs))

    params = (w1f, b1f, w2f, b2f,
              w1g, b1g, w2g, b2g,
              w1h, b1h, w2h, b2h,
              wout, bout)

    premises = jax.random.randint(keys[15], (batch, num_tokens), 0, vocab_size)
    hypotheses = jax.random.randint(keys[16], (batch, num_tokens), 0, vocab_size)

    # embedding lookup = glue (gather) in plain JAX
    A = emb[premises]      # [batch, T, E]
    B = emb[hypotheses]    # [batch, T, E]

    y = decomposable_attention(A, B, params, block_batch=8)
    y = jax.block_until_ready(y)

    y_ref = reference(A, B, params)
    assert y.shape == (batch, num_outputs)
    # bf16 MXU operands + EUP approx reciprocal -> slightly looser tolerance
    # than the pure-f32 path.
    assert jnp.allclose(y, y_ref, atol=2e-2, rtol=2e-2), (y, y_ref)

    print("KERNEL_OK")
</pallas_src>

<mosaic_0001>
module attributes {stable_mosaic.version = 11 : i64} {
  func.func @decomposable_attention_kernel(%arg0: i32, %arg1: memref<8x8x32xbf16, #tpu.memory_space<vmem>>, %arg2: memref<8x8x32xbf16, #tpu.memory_space<vmem>>, %arg3: memref<32x64xbf16, #tpu.memory_space<vmem>>, %arg4: memref<1x64xf32, #tpu.memory_space<vmem>>, %arg5: memref<64x64xbf16, #tpu.memory_space<vmem>>, %arg6: memref<1x64xf32, #tpu.memory_space<vmem>>, %arg7: memref<32x64xbf16, #tpu.memory_space<vmem>>, %arg8: memref<32x64xbf16, #tpu.memory_space<vmem>>, %arg9: memref<1x64xf32, #tpu.memory_space<vmem>>, %arg10: memref<64x64xbf16, #tpu.memory_space<vmem>>, %arg11: memref<1x64xf32, #tpu.memory_space<vmem>>, %arg12: memref<64x64xbf16, #tpu.memory_space<vmem>>, %arg13: memref<64x64xbf16, #tpu.memory_space<vmem>>, %arg14: memref<1x64xf32, #tpu.memory_space<vmem>>, %arg15: memref<64x64xbf16, #tpu.memory_space<vmem>>, %arg16: memref<1x64xf32, #tpu.memory_space<vmem>>, %arg17: memref<64x128xbf16, #tpu.memory_space<vmem>>, %arg18: memref<1x128xf32, #tpu.memory_space<vmem>>, %arg19: memref<8x128xf32, #tpu.memory_space<vmem>>) attributes {dimension_semantics = [#tpu.dimension_semantics<parallel>], iteration_bounds = array<i64: 2>, scalar_prefetch = 0 : i64, scratch_operands = 0 : i64, tpu.core_type = #tpu.core_type<tc>, window_params = [{transform_indices = @transform_0, window_bounds = array<i64: 8, 8, 32>}, {transform_indices = @transform_1, window_bounds = array<i64: 8, 8, 32>}, {pipeline_mode = #tpu.pipeline_mode<synchronous>, transform_indices = @transform_2, window_bounds = array<i64: 32, 64>}, {pipeline_mode = #tpu.pipeline_mode<synchronous>, transform_indices = @transform_3, window_bounds = array<i64: 1, 64>}, {pipeline_mode = #tpu.pipeline_mode<synchronous>, transform_indices = @transform_4, window_bounds = array<i64: 64, 64>}, {pipeline_mode = #tpu.pipeline_mode<synchronous>, transform_indices = @transform_5, window_bounds = array<i64: 1, 64>}, {pipeline_mode = #tpu.pipeline_mode<synchronous>, transform_indices = @transform_6, window_bounds = array<i64: 32, 64>}, {pipeline_mode = #tpu.pipeline_mode<synchronous>, transform_indices = @transform_7, window_bounds = array<i64: 32, 64>}, {pipeline_mode = #tpu.pipeline_mode<synchronous>, transform_indices = @transform_8, window_bounds = array<i64: 1, 64>}, {pipeline_mode = #tpu.pipeline_mode<synchronous>, transform_indices = @transform_9, window_bounds = array<i64: 64, 64>}, {pipeline_mode = #tpu.pipeline_mode<synchronous>, transform_indices = @transform_10, window_bounds = array<i64: 1, 64>}, {pipeline_mode = #tpu.pipeline_mode<synchronous>, transform_indices = @transform_11, window_bounds = array<i64: 64, 64>}, {pipeline_mode = #tpu.pipeline_mode<synchronous>, transform_indices = @transform_12, window_bounds = array<i64: 64, 64>}, {pipeline_mode = #tpu.pipeline_mode<synchronous>, transform_indices = @transform_13, window_bounds = array<i64: 1, 64>}, {pipeline_mode = #tpu.pipeline_mode<synchronous>, transform_indices = @transform_14, window_bounds = array<i64: 64, 64>}, {pipeline_mode = #tpu.pipeline_mode<synchronous>, transform_indices = @transform_15, window_bounds = array<i64: 1, 64>}, {pipeline_mode = #tpu.pipeline_mode<synchronous>, transform_indices = @transform_16, window_bounds = array<i64: 64, 128>}, {pipeline_mode = #tpu.pipeline_mode<synchronous>, transform_indices = @transform_17, window_bounds = array<i64: 1, 128>}, {transform_indices = @transform_18, window_bounds = array<i64: 8, 128>}]} {
    %c0 = arith.constant 0 : index
    %c0_0 = arith.constant 0 : index
    %c0_1 = arith.constant 0 : index
    %0 = vector.load %arg1[%c0, %c0_0, %c0_1] : memref<8x8x32xbf16, #tpu.memory_space<vmem>>, vector<8x8x32xbf16>
    %c0_2 = arith.constant 0 : index
    %c0_3 = arith.constant 0 : index
    %c0_4 = arith.constant 0 : index
    %1 = vector.load %arg2[%c0_2, %c0_3, %c0_4] : memref<8x8x32xbf16, #tpu.memory_space<vmem>>, vector<8x8x32xbf16>
    %c0_5 = arith.constant 0 : index
    %c0_6 = arith.constant 0 : index
    %2 = vector.load %arg3[%c0_5, %c0_6] : memref<32x64xbf16, #tpu.memory_space<vmem>>, vector<32x64xbf16>
    %c0_7 = arith.constant 0 : index
    %c0_8 = arith.constant 0 : index
    %3 = vector.load %arg4[%c0_7, %c0_8] : memref<1x64xf32, #tpu.memory_space<vmem>>, vector<1x64xf32>
    %c0_9 = arith.constant 0 : index
    %c0_10 = arith.constant 0 : index
    %4 = vector.load %arg5[%c0_9, %c0_10] : memref<64x64xbf16, #tpu.memory_space<vmem>>, vector<64x64xbf16>
    %c0_11 = arith.constant 0 : index
    %c0_12 = arith.constant 0 : index
    %5 = vector.load %arg6[%c0_11, %c0_12] : memref<1x64xf32, #tpu.memory_space<vmem>>, vector<1x64xf32>
    %c0_13 = arith.constant 0 : index
    %c0_14 = arith.constant 0 : index
    %6 = vector.load %arg7[%c0_13, %c0_14] : memref<32x64xbf16, #tpu.memory_space<vmem>>, vector<32x64xbf16>
    %c0_15 = arith.constant 0 : index
    %c0_16 = arith.constant 0 : index
    %7 = vector.load %arg8[%c0_15, %c0_16] : memref<32x64xbf16, #tpu.memory_space<vmem>>, vector<32x64xbf16>
    %c0_17 = arith.constant 0 : index
    %c0_18 = arith.constant 0 : index
    %8 = vector.load %arg9[%c0_17, %c0_18] : memref<1x64xf32, #tpu.memory_space<vmem>>, vector<1x64xf32>
    %c0_19 = arith.constant 0 : index
    %c0_20 = arith.constant 0 : index
    %9 = vector.load %arg10[%c0_19, %c0_20] : memref<64x64xbf16, #tpu.memory_space<vmem>>, vector<64x64xbf16>
    %c0_21 = arith.constant 0 : index
    %c0_22 = arith.constant 0 : index
    %10 = vector.load %arg11[%c0_21, %c0_22] : memref<1x64xf32, #tpu.memory_space<vmem>>, vector<1x64xf32>
    %c0_23 = arith.constant 0 : index
    %c0_24 = arith.constant 0 : index
    %11 = vector.load %arg12[%c0_23, %c0_24] : memref<64x64xbf16, #tpu.memory_space<vmem>>, vector<64x64xbf16>
    %c0_25 = arith.constant 0 : index
    %c0_26 = arith.constant 0 : index
    %12 = vector.load %arg13[%c0_25, %c0_26] : memref<64x64xbf16, #tpu.memory_space<vmem>>, vector<64x64xbf16>
    %c0_27 = arith.constant 0 : index
    %c0_28 = arith.constant 0 : index
    %13 = vector.load %arg14[%c0_27, %c0_28] : memref<1x64xf32, #tpu.memory_space<vmem>>, vector<1x64xf32>
    %c0_29 = arith.constant 0 : index
    %c0_30 = arith.constant 0 : index
    %14 = vector.load %arg15[%c0_29, %c0_30] : memref<64x64xbf16, #tpu.memory_space<vmem>>, vector<64x64xbf16>
    %c0_31 = arith.constant 0 : index
    %c0_32 = arith.constant 0 : index
    %15 = vector.load %arg16[%c0_31, %c0_32] : memref<1x64xf32, #tpu.memory_space<vmem>>, vector<1x64xf32>
    %c0_33 = arith.constant 0 : index
    %c0_34 = arith.constant 0 : index
    %16 = vector.load %arg17[%c0_33, %c0_34] : memref<64x128xbf16, #tpu.memory_space<vmem>>, vector<64x128xbf16>
    %c0_35 = arith.constant 0 : index
    %c0_36 = arith.constant 0 : index
    %17 = vector.load %arg18[%c0_35, %c0_36] : memref<1x128xf32, #tpu.memory_space<vmem>>, vector<1x128xf32>
    %18 = vector.shape_cast %0 : vector<8x8x32xbf16> to vector<64x32xbf16>
    %19 = vector.shape_cast %1 : vector<8x8x32xbf16> to vector<64x32xbf16>
    %20 = tpu.concatenate %18, %19 in 0 : vector<64x32xbf16>, vector<64x32xbf16> -> vector<128x32xbf16>
    %cst = arith.constant dense<0.000000e+00> : vector<128x64xf32>
    %21 = tpu.matmul %20, %2, %cst {dimension_numbers = #tpu.dot_dimension_numbers<[1], [0], [0], [1], [0, 0, 1, 1], [], []>} : vector<128x32xbf16>, vector<32x64xbf16>, vector<128x64xf32> -> vector<128x64xf32>
    %22 = vector.broadcast %3 : vector<1x64xf32> to vector<128x64xf32>
    %23 = arith.addf %21, %22 : vector<128x64xf32>
    %cst_37 = arith.constant 0.000000e+00 : f32
    %24 = vector.broadcast %cst_37 : f32 to vector<128x64xf32>
    %25 = arith.maximumf %23, %24 : vector<128x64xf32>
    %26 = arith.truncf %25 : vector<128x64xf32> to vector<128x64xbf16>
    %cst_38 = arith.constant dense<0.000000e+00> : vector<128x64xf32>
    %27 = tpu.matmul %26, %4, %cst_38 {dimension_numbers = #tpu.dot_dimension_numbers<[1], [0], [0], [1], [0, 0, 1, 1], [], []>} : vector<128x64xbf16>, vector<64x64xbf16>, vector<128x64xf32> -> vector<128x64xf32>
    %28 = vector.broadcast %5 : vector<1x64xf32> to vector<128x64xf32>
    %29 = arith.addf %27, %28 : vector<128x64xf32>
    %cst_39 = arith.constant 0.000000e+00 : f32
    %30 = vector.broadcast %cst_39 : f32 to vector<128x64xf32>
    %31 = arith.maximumf %29, %30 : vector<128x64xf32>
    %32 = vector.extract_strided_slice %31 {offsets = [0, 0], sizes = [64, 64], strides = [1, 1]} : vector<128x64xf32> to vector<64x64xf32>
    %33 = vector.shape_cast %32 : vector<64x64xf32> to vector<8x8x64xf32>
    %34 = vector.extract_strided_slice %31 {offsets = [64, 0], sizes = [64, 64], strides = [1, 1]} : vector<128x64xf32> to vector<64x64xf32>
    %35 = vector.shape_cast %34 : vector<64x64xf32> to vector<8x8x64xf32>
    %36 = arith.truncf %33 : vector<8x8x64xf32> to vector<8x8x64xbf16>
    %37 = arith.truncf %35 : vector<8x8x64xf32> to vector<8x8x64xbf16>
    %cst_40 = arith.constant dense<0.000000e+00> : vector<8x8x8xf32>
    %38 = tpu.matmul %36, %37, %cst_40 {dimension_numbers = #tpu.dot_dimension_numbers<[2], [2], [1], [1], [0, 0, 0, 1, 1, 1], [0], [0]>} : vector<8x8x64xbf16>, vector<8x8x64xbf16>, vector<8x8x8xf32> -> vector<8x8x8xf32>
    %cst_41 = arith.constant dense<0xFF800000> : vector<8x8xf32>
    %39 = vector.multi_reduction <maximumf>, %38, %cst_41 [2] : vector<8x8x8xf32> to vector<8x8xf32>
    %40 = vector.shape_cast %39 : vector<8x8xf32> to vector<8x8x1xf32>
    %41 = vector.broadcast %40 : vector<8x8x1xf32> to vector<8x8x8xf32>
    %42 = arith.subf %38, %41 : vector<8x8x8xf32>
    %43 = math.exp %42 : vector<8x8x8xf32>
    %cst_42 = arith.constant dense<0.000000e+00> : vector<8x8xf32>
    %44 = vector.multi_reduction <add>, %43, %cst_42 [2] : vector<8x8x8xf32> to vector<8x8xf32>
    %45 = vector.shape_cast %44 : vector<8x8xf32> to vector<8x8x1xf32>
    %46 = tpu.reciprocal %45 {approx = true} : vector<8x8x1xf32> -> vector<8x8x1xf32>
    %47 = vector.broadcast %46 : vector<8x8x1xf32> to vector<8x8x8xf32>
    %48 = arith.mulf %43, %47 : vector<8x8x8xf32>
    %cst_43 = arith.constant dense<0xFF800000> : vector<8x8xf32>
    %49 = vector.multi_reduction <maximumf>, %38, %cst_43 [1] : vector<8x8x8xf32> to vector<8x8xf32>
    %50 = vector.shape_cast %49 : vector<8x8xf32> to vector<8x1x8xf32>
    %51 = vector.broadcast %50 : vector<8x1x8xf32> to vector<8x8x8xf32>
    %52 = arith.subf %38, %51 : vector<8x8x8xf32>
    %53 = math.exp %52 : vector<8x8x8xf32>
    %cst_44 = arith.constant dense<0.000000e+00> : vector<8x8xf32>
    %54 = vector.multi_reduction <add>, %53, %cst_44 [1] : vector<8x8x8xf32> to vector<8x8xf32>
    %55 = vector.shape_cast %54 : vector<8x8xf32> to vector<8x1x8xf32>
    %56 = tpu.reciprocal %55 {approx = true} : vector<8x1x8xf32> -> vector<8x1x8xf32>
    %57 = vector.broadcast %56 : vector<8x1x8xf32> to vector<8x8x8xf32>
    %58 = arith.mulf %53, %57 : vector<8x8x8xf32>
    %59 = arith.truncf %48 : vector<8x8x8xf32> to vector<8x8x8xbf16>
    %cst_45 = arith.constant dense<0.000000e+00> : vector<8x8x32xf32>
    %60 = tpu.matmul %59, %1, %cst_45 {dimension_numbers = #tpu.dot_dimension_numbers<[2], [1], [1], [2], [0, 0, 0, 1, 1, 2], [0], [0]>} : vector<8x8x8xbf16>, vector<8x8x32xbf16>, vector<8x8x32xf32> -> vector<8x8x32xf32>
    %61 = arith.truncf %58 : vector<8x8x8xf32> to vector<8x8x8xbf16>
    %cst_46 = arith.constant dense<0.000000e+00> : vector<8x8x32xf32>
    %62 = tpu.matmul %61, %0, %cst_46 {dimension_numbers = #tpu.dot_dimension_numbers<[1], [1], [2], [2], [0, 0, 0, 2, 1, 2], [0], [0]>} : vector<8x8x8xbf16>, vector<8x8x32xbf16>, vector<8x8x32xf32> -> vector<8x8x32xf32>
    %63 = vector.shape_cast %60 : vector<8x8x32xf32> to vector<64x32xf32>
    %64 = vector.shape_cast %62 : vector<8x8x32xf32> to vector<64x32xf32>
    %65 = tpu.concatenate %63, %64 in 0 : vector<64x32xf32>, vector<64x32xf32> -> vector<128x32xf32>
    %cst_47 = arith.constant dense<0.000000e+00> : vector<128x64xf32>
    %66 = tpu.matmul %20, %6, %cst_47 {dimension_numbers = #tpu.dot_dimension_numbers<[1], [0], [0], [1], [0, 0, 1, 1], [], []>} : vector<128x32xbf16>, vector<32x64xbf16>, vector<128x64xf32> -> vector<128x64xf32>
    %67 = arith.truncf %65 : vector<128x32xf32> to vector<128x32xbf16>
    %cst_48 = arith.constant dense<0.000000e+00> : vector<128x64xf32>
    %68 = tpu.matmul %67, %7, %cst_48 {dimension_numbers = #tpu.dot_dimension_numbers<[1], [0], [0], [1], [0, 0, 1, 1], [], []>} : vector<128x32xbf16>, vector<32x64xbf16>, vector<128x64xf32> -> vector<128x64xf32>
    %69 = arith.addf %66, %68 : vector<128x64xf32>
    %70 = vector.broadcast %8 : vector<1x64xf32> to vector<128x64xf32>
    %71 = arith.addf %69, %70 : vector<128x64xf32>
    %cst_49 = arith.constant 0.000000e+00 : f32
    %72 = vector.broadcast %cst_49 : f32 to vector<128x64xf32>
    %73 = arith.maximumf %71, %72 : vector<128x64xf32>
    %74 = arith.truncf %73 : vector<128x64xf32> to vector<128x64xbf16>
    %cst_50 = arith.constant dense<0.000000e+00> : vector<128x64xf32>
    %75 = tpu.matmul %74, %9, %cst_50 {dimension_numbers = #tpu.dot_dimension_numbers<[1], [0], [0], [1], [0, 0, 1, 1], [], []>} : vector<128x64xbf16>, vector<64x64xbf16>, vector<128x64xf32> -> vector<128x64xf32>
    %76 = vector.broadcast %10 : vector<1x64xf32> to vector<128x64xf32>
    %77 = arith.addf %75, %76 : vector<128x64xf32>
    %cst_51 = arith.constant 0.000000e+00 : f32
    %78 = vector.broadcast %cst_51 : f32 to vector<128x64xf32>
    %79 = arith.maximumf %77, %78 : vector<128x64xf32>
    %80 = vector.extract_strided_slice %79 {offsets = [0, 0], sizes = [64, 64], strides = [1, 1]} : vector<128x64xf32> to vector<64x64xf32>
    %81 = vector.shape_cast %80 : vector<64x64xf32> to vector<8x8x64xf32>
    %cst_52 = arith.constant dense<0.000000e+00> : vector<8x64xf32>
    %82 = vector.multi_reduction <add>, %81, %cst_52 [1] : vector<8x8x64xf32> to vector<8x64xf32>
    %83 = vector.extract_strided_slice %79 {offsets = [64, 0], sizes = [64, 64], strides = [1, 1]} : vector<128x64xf32> to vector<64x64xf32>
    %84 = vector.shape_cast %83 : vector<64x64xf32> to vector<8x8x64xf32>
    %cst_53 = arith.constant dense<0.000000e+00> : vector<8x64xf32>
    %85 = vector.multi_reduction <add>, %84, %cst_53 [1] : vector<8x8x64xf32> to vector<8x64xf32>
    %86 = arith.truncf %82 : vector<8x64xf32> to vector<8x64xbf16>
    %cst_54 = arith.constant dense<0.000000e+00> : vector<8x64xf32>
    %87 = tpu.matmul %86, %11, %cst_54 {dimension_numbers = #tpu.dot_dimension_numbers<[1], [0], [0], [1], [0, 0, 1, 1], [], []>} : vector<8x64xbf16>, vector<64x64xbf16>, vector<8x64xf32> -> vector<8x64xf32>
    %88 = arith.truncf %85 : vector<8x64xf32> to vector<8x64xbf16>
    %cst_55 = arith.constant dense<0.000000e+00> : vector<8x64xf32>
    %89 = tpu.matmul %88, %12, %cst_55 {dimension_numbers = #tpu.dot_dimension_numbers<[1], [0], [0], [1], [0, 0, 1, 1], [], []>} : vector<8x64xbf16>, vector<64x64xbf16>, vector<8x64xf32> -> vector<8x64xf32>
    %90 = arith.addf %87, %89 : vector<8x64xf32>
    %91 = vector.broadcast %13 : vector<1x64xf32> to vector<8x64xf32>
    %92 = arith.addf %90, %91 : vector<8x64xf32>
    %cst_56 = arith.constant 0.000000e+00 : f32
    %93 = vector.broadcast %cst_56 : f32 to vector<8x64xf32>
    %94 = arith.maximumf %92, %93 : vector<8x64xf32>
    %95 = arith.truncf %94 : vector<8x64xf32> to vector<8x64xbf16>
    %cst_57 = arith.constant dense<0.000000e+00> : vector<8x64xf32>
    %96 = tpu.matmul %95, %14, %cst_57 {dimension_numbers = #tpu.dot_dimension_numbers<[1], [0], [0], [1], [0, 0, 1, 1], [], []>} : vector<8x64xbf16>, vector<64x64xbf16>, vector<8x64xf32> -> vector<8x64xf32>
    %97 = vector.broadcast %15 : vector<1x64xf32> to vector<8x64xf32>
    %98 = arith.addf %96, %97 : vector<8x64xf32>
    %cst_58 = arith.constant 0.000000e+00 : f32
    %99 = vector.broadcast %cst_58 : f32 to vector<8x64xf32>
    %100 = arith.maximumf %98, %99 : vector<8x64xf32>
    %101 = arith.truncf %100 : vector<8x64xf32> to vector<8x64xbf16>
    %cst_59 = arith.constant dense<0.000000e+00> : vector<8x128xf32>
    %102 = tpu.matmul %101, %16, %cst_59 {dimension_numbers = #tpu.dot_dimension_numbers<[1], [0], [0], [1], [0, 0, 1, 1], [], []>} : vector<8x64xbf16>, vector<64x128xbf16>, vector<8x128xf32> -> vector<8x128xf32>
    %103 = vector.broadcast %17 : vector<1x128xf32> to vector<8x128xf32>
    %104 = arith.addf %102, %103 : vector<8x128xf32>
    %c0_60 = arith.constant 0 : index
    %c0_61 = arith.constant 0 : index
    %105 = vector.load %arg19[%c0_60, %c0_61] : memref<8x128xf32, #tpu.memory_space<vmem>>, vector<8x128xf32>
    tpu.vector_store %arg19[%c0_60, %c0_61], %104 {strides = array<i32>} : memref<8x128xf32, #tpu.memory_space<vmem>>, vector<8x128xf32>,
    return
  }
  func.func @transform_0(%arg0: i32) -> (i32, i32, i32) {
    %c0_i32 = arith.constant 0 : i32
    %c0_i32_0 = arith.constant 0 : i32
    %c0_i32_1 = arith.constant 0 : i32
    return %arg0, %c0_i32, %c0_i32_0 : i32, i32, i32
  }
  func.func @transform_1(%arg0: i32) -> (i32, i32, i32) {
    %c0_i32 = arith.constant 0 : i32
    %c0_i32_0 = arith.constant 0 : i32
    %c0_i32_1 = arith.constant 0 : i32
    return %arg0, %c0_i32, %c0_i32_0 : i32, i32, i32
  }
  func.func @transform_2(%arg0: i32) -> (i32, i32) {
    %c0_i32 = arith.constant 0 : i32
    %c0_i32_0 = arith.constant 0 : i32
    %c0_i32_1 = arith.constant 0 : i32
    return %c0_i32, %c0_i32_0 : i32, i32
  }
  func.func @transform_3(%arg0: i32) -> (i32, i32) {
    %c0_i32 = arith.constant 0 : i32
    %c0_i32_0 = arith.constant 0 : i32
    %c0_i32_1 = arith.constant 0 : i32
    return %c0_i32, %c0_i32_0 : i32, i32
  }
  func.func @transform_4(%arg0: i32) -> (i32, i32) {
    %c0_i32 = arith.constant 0 : i32
    %c0_i32_0 = arith.constant 0 : i32
    %c0_i32_1 = arith.constant 0 : i32
    return %c0_i32, %c0_i32_0 : i32, i32
  }
  func.func @transform_5(%arg0: i32) -> (i32, i32) {
    %c0_i32 = arith.constant 0 : i32
    %c0_i32_0 = arith.constant 0 : i32
    %c0_i32_1 = arith.constant 0 : i32
    return %c0_i32, %c0_i32_0 : i32, i32
  }
  func.func @transform_6(%arg0: i32) -> (i32, i32) {
    %c0_i32 = arith.constant 0 : i32
    %c0_i32_0 = arith.constant 0 : i32
    %c0_i32_1 = arith.constant 0 : i32
    return %c0_i32, %c0_i32_0 : i32, i32
  }
  func.func @transform_7(%arg0: i32) -> (i32, i32) {
    %c0_i32 = arith.constant 0 : i32
    %c0_i32_0 = arith.constant 0 : i32
    %c0_i32_1 = arith.constant 0 : i32
    return %c0_i32, %c0_i32_0 : i32, i32
  }
  func.func @transform_8(%arg0: i32) -> (i32, i32) {
    %c0_i32 = arith.constant 0 : i32
    %c0_i32_0 = arith.constant 0 : i32
    %c0_i32_1 = arith.constant 0 : i32
    return %c0_i32, %c0_i32_0 : i32, i32
  }
  func.func @transform_9(%arg0: i32) -> (i32, i32) {
    %c0_i32 = arith.constant 0 : i32
    %c0_i32_0 = arith.constant 0 : i32
    %c0_i32_1 = arith.constant 0 : i32
    return %c0_i32, %c0_i32_0 : i32, i32
  }
  func.func @transform_10(%arg0: i32) -> (i32, i32) {
    %c0_i32 = arith.constant 0 : i32
    %c0_i32_0 = arith.constant 0 : i32
    %c0_i32_1 = arith.constant 0 : i32
    return %c0_i32, %c0_i32_0 : i32, i32
  }
  func.func @transform_11(%arg0: i32) -> (i32, i32) {
    %c0_i32 = arith.constant 0 : i32
    %c0_i32_0 = arith.constant 0 : i32
    %c0_i32_1 = arith.constant 0 : i32
    return %c0_i32, %c0_i32_0 : i32, i32
  }
  func.func @transform_12(%arg0: i32) -> (i32, i32) {
    %c0_i32 = arith.constant 0 : i32
    %c0_i32_0 = arith.constant 0 : i32
    %c0_i32_1 = arith.constant 0 : i32
    return %c0_i32, %c0_i32_0 : i32, i32
  }
  func.func @transform_13(%arg0: i32) -> (i32, i32) {
    %c0_i32 = arith.constant 0 : i32
    %c0_i32_0 = arith.constant 0 : i32
    %c0_i32_1 = arith.constant 0 : i32
    return %c0_i32, %c0_i32_0 : i32, i32
  }
  func.func @transform_14(%arg0: i32) -> (i32, i32) {
    %c0_i32 = arith.constant 0 : i32
    %c0_i32_0 = arith.constant 0 : i32
    %c0_i32_1 = arith.constant 0 : i32
    return %c0_i32, %c0_i32_0 : i32, i32
  }
  func.func @transform_15(%arg0: i32) -> (i32, i32) {
    %c0_i32 = arith.constant 0 : i32
    %c0_i32_0 = arith.constant 0 : i32
    %c0_i32_1 = arith.constant 0 : i32
    return %c0_i32, %c0_i32_0 : i32, i32
  }
  func.func @transform_16(%arg0: i32) -> (i32, i32) {
    %c0_i32 = arith.constant 0 : i32
    %c0_i32_0 = arith.constant 0 : i32
    %c0_i32_1 = arith.constant 0 : i32
    return %c0_i32, %c0_i32_0 : i32, i32
  }
  func.func @transform_17(%arg0: i32) -> (i32, i32) {
    %c0_i32 = arith.constant 0 : i32
    %c0_i32_0 = arith.constant 0 : i32
    %c0_i32_1 = arith.constant 0 : i32
    return %c0_i32, %c0_i32_0 : i32, i32
  }
  func.func @transform_18(%arg0: i32) -> (i32, i32) {
    %c0_i32 = arith.constant 0 : i32
    %c0_i32_0 = arith.constant 0 : i32
    return %arg0, %c0_i32 : i32, i32
  }
}

</mosaic_0001>

<llo_original>
// kernel: tpu_custom_call.1
$region0: #{tpu_custom_call.1}
  #allocation0 [shape = 'u32[]', space=smem, size = 0x4, offset = 0x4, fixed_abs, tag = 'smem constant byte address 0x4 - core index']
  #allocation1 [shape = 'u32[72,128]{1,0:T(1,128)}', space=vmem, size = 0x9000, scoped, tag = 'internal scratch']
  %s0 = inlined_call_operand.hbm [shape: bf16[16,8,32], index: 0, kind: input, shape index: {}]
  %s1 = inlined_call_operand.hbm [shape: bf16[16,8,32], index: 1, kind: input, shape index: {}]
  %s2 = inlined_call_operand.hbm [shape: bf16[32,64], index: 2, kind: input, shape index: {}]
  %s3 = inlined_call_operand.vmem [shape: f32[1,64], index: 3, kind: input, shape index: {}]
  %s4 = inlined_call_operand.hbm [shape: bf16[64,64], index: 4, kind: input, shape index: {}]
  %s5 = inlined_call_operand.vmem [shape: f32[1,64], index: 5, kind: input, shape index: {}]
  %s6 = inlined_call_operand.hbm [shape: bf16[32,64], index: 6, kind: input, shape index: {}]
  %s7 = inlined_call_operand.hbm [shape: bf16[32,64], index: 7, kind: input, shape index: {}]
  %s8 = inlined_call_operand.vmem [shape: f32[1,64], index: 8, kind: input, shape index: {}]
  %s9 = inlined_call_operand.hbm [shape: bf16[64,64], index: 9, kind: input, shape index: {}]
  %s10 = inlined_call_operand.vmem [shape: f32[1,64], index: 10, kind: input, shape index: {}]
  %s11 = inlined_call_operand.hbm [shape: bf16[64,64], index: 11, kind: input, shape index: {}]
  %s12 = inlined_call_operand.hbm [shape: bf16[64,64], index: 12, kind: input, shape index: {}]
  %s13 = inlined_call_operand.vmem [shape: f32[1,64], index: 13, kind: input, shape index: {}]
  %s14 = inlined_call_operand.hbm [shape: bf16[64,64], index: 14, kind: input, shape index: {}]
  %s15 = inlined_call_operand.vmem [shape: f32[1,64], index: 15, kind: input, shape index: {}]
  %s16 = inlined_call_operand.hbm [shape: bf16[64,128], index: 16, kind: input, shape index: {}]
  %s17 = inlined_call_operand.vmem [shape: f32[1,128], index: 17, kind: input, shape index: {}]
  %s18 = inlined_call_operand.hbm [shape: f32[16,128], index: 18, kind: output, shape index: {}]
  %s19 = sld [smem:[#allocation0]]
  $region149: #{tpu_custom_call.1} parent=0
    _
  %s21 = ssub.s32 1, %s19
  %s22 = scalar_select 0, %s21, %s19
  $region1: #{tpu_custom_call.1} parent=0
    #allocation2 [shape = 'u8[32768]{0}', space=vmem, size = 0x8000, scoped, tag = 'input window, operand 0']
    #allocation3 [shape = 's32[2]{0}', space=sflag, size = 0x8, scoped, tag = 'scoped memory for tpu_custom_call.1']
    #allocation4 [shape = 's32[2]{0}', space=sflag, size = 0x8, scoped, tag = 'scoped memory for tpu_custom_call.1']
    #allocation5 [shape = 'u8[32768]{0}', space=vmem, size = 0x8000, scoped, tag = 'input window, operand 1']
    #allocation6 [shape = 's32[2]{0}', space=sflag, size = 0x8, scoped, tag = 'scoped memory for tpu_custom_call.1']
    #allocation7 [shape = 'u8[8192]{0}', space=vmem, size = 0x2000, scoped, tag = 'input window, operand 2, single buffered']
    #allocation8 [shape = 'u8[16384]{0}', space=vmem, size = 0x4000, scoped, tag = 'input window, operand 4, single buffered']
    #allocation9 [shape = 's32[1]{0}', space=sflag, size = 0x4, scoped, tag = 'scoped memory for tpu_custom_call.1']
    #allocation10 [shape = 'u8[8192]{0}', space=vmem, size = 0x2000, scoped, tag = 'input window, operand 6, single buffered']
    #allocation11 [shape = 'u8[8192]{0}', space=vmem, size = 0x2000, scoped, tag = 'input window, operand 7, single buffered']
    #allocation12 [shape = 's32[1]{0}', space=sflag, size = 0x4, scoped, tag = 'scoped memory for tpu_custom_call.1']
    #allocation13 [shape = 'u8[16384]{0}', space=vmem, size = 0x4000, scoped, tag = 'input window, operand 9, single buffered']
    #allocation14 [shape = 'u8[16384]{0}', space=vmem, size = 0x4000, scoped, tag = 'input window, operand 11, single buffered']
    #allocation15 [shape = 's32[1]{0}', space=sflag, size = 0x4, scoped, tag = 'scoped memory for tpu_custom_call.1']
    #allocation16 [shape = 'u8[16384]{0}', space=vmem, size = 0x4000, scoped, tag = 'input window, operand 12, single buffered']
    #allocation17 [shape = 'u8[16384]{0}', space=vmem, size = 0x4000, scoped, tag = 'input window, operand 14, single buffered']
    #allocation18 [shape = 's32[1]{0}', space=sflag, size = 0x4, scoped, tag = 'scoped memory for tpu_custom_call.1']
    #allocation19 [shape = 'u8[16384]{0}', space=vmem, size = 0x4000, scoped, tag = 'input window, operand 16, single buffered']
    #allocation20 [shape = 'u8[8192]{0}', space=vmem, size = 0x2000, scoped, tag = 'output window, operand 0']
    %23 = vsyncpa [#allocation3], 0
    %s24 = scalar_lea.sflag [#allocation3], 1
    %25 = vsyncpa %s24, 0
    %26 = vsyncpa [#allocation6], 0
    %s27 = scalar_lea.sflag [#allocation6], 1
    %28 = vsyncpa %s27, 0
    %29 = vsyncpa [#allocation9], 0
    %30 = vsyncpa [#allocation12], 0
    %31 = vsyncpa [#allocation15], 0
    %32 = vsyncpa [#allocation18], 0
    %33 = vsyncpa [#allocation4], 0
    %s34 = scalar_lea.sflag [#allocation4], 1
    %35 = vsyncpa %s34, 0
    loop: start=0, step=1, limit=4
    $region2: #{tpu_custom_call.1} parent=1 // loop_pre_header
      _
    $region3: #{tpu_custom_call.1} parent=1 // loop_header
      %s37 = sphi 0, %s41
      %p38 = scmp.ge.s32.totalorder %s37, 4
      %s47 = sphi 0, %s49
      %s50 = sphi 0, %s47
      %s51 = sphi 0, %s50
      %s67 = sphi 0, %s51
      %s73 = sphi 0, %s75
      %s76 = sphi 0, %s73
      %s77 = sphi 0, %s76
      %s93 = sphi 0, %s77
      %s97 = sphi 0, %s97
      %s99 = sphi 0, %s97
      %s100 = sphi 0, %s99
      %s114 = sphi 0, %s100
      %s118 = sphi 0, %s118
      %s120 = sphi 0, %s118
      %s121 = sphi 0, %s120
      %s135 = sphi 0, %s121
      %s139 = sphi 0, %s139
      %s141 = sphi 0, %s139
      %s142 = sphi 0, %s141
      %s156 = sphi 0, %s142
      %s160 = sphi 0, %s160
      %s162 = sphi 0, %s160
      %s163 = sphi 0, %s162
      %s177 = sphi 0, %s163
      %s181 = sphi 0, %s181
      %s183 = sphi 0, %s181
      %s184 = sphi 0, %s183
      %s198 = sphi 0, %s184
      %s202 = sphi 0, %s202
      %s204 = sphi 0, %s202
      %s205 = sphi 0, %s204
      %s219 = sphi 0, %s205
      %s223 = sphi 0, %s223
      %s225 = sphi 0, %s223
      %s226 = sphi 0, %s225
      %s240 = sphi 0, %s226
      %s244 = sphi 0, %s244
      %s246 = sphi 0, %s244
      %s247 = sphi 0, %s246
      %s261 = sphi 0, %s247
      %s265 = sphi 0, %s265
      %s267 = sphi 0, %s265
      %s268 = sphi 0, %s267
      %s282 = sphi 0, %s268
      %s286 = sphi 0, %s286
      %s288 = sphi 0, %s286
      %s289 = sphi 0, %s288
      %s303 = sphi 0, %s289
      %s307 = sphi 0, %s307
      %s309 = sphi 0, %s307
      %s310 = sphi 0, %s309
      %s324 = sphi 0, %s310
      %s328 = sphi 0, %s328
      %s330 = sphi 0, %s328
      %s331 = sphi 0, %s330
      %s345 = sphi 0, %s331
      %s349 = sphi 0, %s349
      %s351 = sphi 0, %s349
      %s352 = sphi 0, %s351
      %s366 = sphi 0, %s352
      %s370 = sphi 0, %s370
      %s372 = sphi 0, %s370
      %s373 = sphi 0, %s372
      %s387 = sphi 0, %s373
      %s391 = sphi 0, %s391
      %s393 = sphi 0, %s391
      %s394 = sphi 0, %s393
      %s408 = sphi 0, %s394
      %s412 = sphi 0, %s412
      %s414 = sphi 0, %s412
      %s415 = sphi 0, %s414
      %s429 = sphi 0, %s415
      %s435 = sphi 0, %s437
      %s438 = sphi 0, %s435
      %s439 = sphi 0, %s438
      %s455 = sphi 0, %s439
    $region4: #{tpu_custom_call.1} parent=1 // loop_header_branch
      %40 = sbr.rel (%p38) target = $region8
    $region5: #{tpu_custom_call.1} parent=1 // loop_body
      %s42 = ssub.s32 %s37, 1
      %s43 = ssub.s32 %s37, 2
      %s44 = sadd.s32 %s37, 1
      %s45 = ssub.s32 %s37, %s44
      %p46 = scmp.eq.s32.totalorder %s45, 0
      %s48 = sadd.s32 %s47, 1
      %s49 = scalar_select %p46, %s47, %s48
      %p52 = pneg %p46
      %p53 = scmp.eq.s32.totalorder %s37, 1
      %p54 = por %p52, %p53
      %p55 = scmp.ne.s32.totalorder %s47, %s50
      %p56 = scmp.eq.s32.totalorder %s37, 0
      %p57 = por %p55, %p56
      %p58 = scmp.ne.s32.totalorder %s47, %s50
      %p59 = scmp.eq.s32.totalorder %s42, 1
      %p60 = por %p58, %p59
      %p61 = scmp.ne.s32.totalorder %s50, %s51
      %p62 = scmp.eq.s32.totalorder %s42, 0
      %p63 = por %p61, %p62
      %p64 = scmp.ne.s32.totalorder %s50, %s51
      %p65 = scmp.eq.s32.totalorder %s43, 1
      %p66 = por %p64, %p65
      %p68 = scmp.ne.s32.totalorder %s51, %s67
      %p69 = scmp.eq.s32.totalorder %s43, 0
      %p70 = por %p68, %p69
      %s71 = ssub.s32 %s37, %s44
      %p72 = scmp.eq.s32.totalorder %s71, 0
      %s74 = sadd.s32 %s73, 1
      %s75 = scalar_select %p72, %s73, %s74
      %p78 = pneg %p72
      %p79 = scmp.eq.s32.totalorder %s37, 1
      %p80 = por %p78, %p79
      %p81 = scmp.ne.s32.totalorder %s73, %s76
      %p82 = scmp.eq.s32.totalorder %s37, 0
      %p83 = por %p81, %p82
      %p84 = scmp.ne.s32.totalorder %s73, %s76
      %p85 = scmp.eq.s32.totalorder %s42, 1
      %p86 = por %p84, %p85
      %p87 = scmp.ne.s32.totalorder %s76, %s77
      %p88 = scmp.eq.s32.totalorder %s42, 0
      %p89 = por %p87, %p88
      %p90 = scmp.ne.s32.totalorder %s76, %s77
      %p91 = scmp.eq.s32.totalorder %s43, 1
      %p92 = por %p90, %p91
      %p94 = scmp.ne.s32.totalorder %s77, %s93
      %p95 = scmp.eq.s32.totalorder %s43, 0
      %p96 = por %p94, %p95
      %s98 = sadd.s32 %s97, 1
      %p101 = scmp.eq.s32.totalorder %s37, 1
      %p102 = scmp.ne.s32.totalorder %s97, %s99
      %p103 = scmp.eq.s32.totalorder %s37, 0
      %p104 = por %p102, %p103
      %p105 = scmp.ne.s32.totalorder %s97, %s99
      %p106 = scmp.eq.s32.totalorder %s42, 1
      %p107 = por %p105, %p106
      %p108 = scmp.ne.s32.totalorder %s99, %s100
      %p109 = scmp.eq.s32.totalorder %s42, 0
      %p110 = por %p108, %p109
      %p111 = scmp.ne.s32.totalorder %s99, %s100
      %p112 = scmp.eq.s32.totalorder %s43, 1
      %p113 = por %p111, %p112
      %p115 = scmp.ne.s32.totalorder %s100, %s114
      %p116 = scmp.eq.s32.totalorder %s43, 0
      %p117 = por %p115, %p116
      %s119 = sadd.s32 %s118, 1
      %p122 = scmp.eq.s32.totalorder %s37, 1
      %p123 = scmp.ne.s32.totalorder %s118, %s120
      %p124 = scmp.eq.s32.totalorder %s37, 0
      %p125 = por %p123, %p124
      %p126 = scmp.ne.s32.totalorder %s118, %s120
      %p127 = scmp.eq.s32.totalorder %s42, 1
      %p128 = por %p126, %p127
      %p129 = scmp.ne.s32.totalorder %s120, %s121
      %p130 = scmp.eq.s32.totalorder %s42, 0
      %p131 = por %p129, %p130
      %p132 = scmp.ne.s32.totalorder %s120, %s121
      %p133 = scmp.eq.s32.totalorder %s43, 1
      %p134 = por %p132, %p133
      %p136 = scmp.ne.s32.totalorder %s121, %s135
      %p137 = scmp.eq.s32.totalorder %s43, 0
      %p138 = por %p136, %p137
      %s140 = sadd.s32 %s139, 1
      %p143 = scmp.eq.s32.totalorder %s37, 1
      %p144 = scmp.ne.s32.totalorder %s139, %s141
      %p145 = scmp.eq.s32.totalorder %s37, 0
      %p146 = por %p144, %p145
      %p147 = scmp.ne.s32.totalorder %s139, %s141
      %p148 = scmp.eq.s32.totalorder %s42, 1
      %p149 = por %p147, %p148
      %p150 = scmp.ne.s32.totalorder %s141, %s142
      %p151 = scmp.eq.s32.totalorder %s42, 0
      %p152 = por %p150, %p151
      %p153 = scmp.ne.s32.totalorder %s141, %s142
      %p154 = scmp.eq.s32.totalorder %s43, 1
      %p155 = por %p153, %p154
      %p157 = scmp.ne.s32.totalorder %s142, %s156
      %p158 = scmp.eq.s32.totalorder %s43, 0
      %p159 = por %p157, %p158
      %s161 = sadd.s32 %s160, 1
      %p164 = scmp.eq.s32.totalorder %s37, 1
      %p165 = scmp.ne.s32.totalorder %s160, %s162
      %p166 = scmp.eq.s32.totalorder %s37, 0
      %p167 = por %p165, %p166
      %p168 = scmp.ne.s32.totalorder %s160, %s162
      %p169 = scmp.eq.s32.totalorder %s42, 1
      %p170 = por %p168, %p169
      %p171 = scmp.ne.s32.totalorder %s162, %s163
      %p172 = scmp.eq.s32.totalorder %s42, 0
      %p173 = por %p171, %p172
      %p174 = scmp.ne.s32.totalorder %s162, %s163
      %p175 = scmp.eq.s32.totalorder %s43, 1
      %p176 = por %p174, %p175
      %p178 = scmp.ne.s32.totalorder %s163, %s177
      %p179 = scmp.eq.s32.totalorder %s43, 0
      %p180 = por %p178, %p179
      %s182 = sadd.s32 %s181, 1
      %p185 = scmp.eq.s32.totalorder %s37, 1
      %p186 = scmp.ne.s32.totalorder %s181, %s183
      %p187 = scmp.eq.s32.totalorder %s37, 0
      %p188 = por %p186, %p187
      %p189 = scmp.ne.s32.totalorder %s181, %s183
      %p190 = scmp.eq.s32.totalorder %s42, 1
      %p191 = por %p189, %p190
      %p192 = scmp.ne.s32.totalorder %s183, %s184
      %p193 = scmp.eq.s32.totalorder %s42, 0
      %p194 = por %p192, %p193
      %p195 = scmp.ne.s32.totalorder %s183, %s184
      %p196 = scmp.eq.s32.totalorder %s43, 1
      %p197 = por %p195, %p196
      %p199 = scmp.ne.s32.totalorder %s184, %s198
      %p200 = scmp.eq.s32.totalorder %s43, 0
      %p201 = por %p199, %p200
      %s203 = sadd.s32 %s202, 1
      %p206 = scmp.eq.s32.totalorder %s37, 1
      %p207 = scmp.ne.s32.totalorder %s202, %s204
      %p208 = scmp.eq.s32.totalorder %s37, 0
      %p209 = por %p207, %p208
      %p210 = scmp.ne.s32.totalorder %s202, %s204
      %p211 = scmp.eq.s32.totalorder %s42, 1
      %p212 = por %p210, %p211
      %p213 = scmp.ne.s32.totalorder %s204, %s205
      %p214 = scmp.eq.s32.totalorder %s42, 0
      %p215 = por %p213, %p214
      %p216 = scmp.ne.s32.totalorder %s204, %s205
      %p217 = scmp.eq.s32.totalorder %s43, 1
      %p218 = por %p216, %p217
      %p220 = scmp.ne.s32.totalorder %s205, %s219
      %p221 = scmp.eq.s32.totalorder %s43, 0
      %p222 = por %p220, %p221
      %s224 = sadd.s32 %s223, 1
      %p227 = scmp.eq.s32.totalorder %s37, 1
      %p228 = scmp.ne.s32.totalorder %s223, %s225
      %p229 = scmp.eq.s32.totalorder %s37, 0
      %p230 = por %p228, %p229
      %p231 = scmp.ne.s32.totalorder %s223, %s225
      %p232 = scmp.eq.s32.totalorder %s42, 1
      %p233 = por %p231, %p232
      %p234 = scmp.ne.s32.totalorder %s225, %s226
      %p235 = scmp.eq.s32.totalorder %s42, 0
      %p236 = por %p234, %p235
      %p237 = scmp.ne.s32.totalorder %s225, %s226
      %p238 = scmp.eq.s32.totalorder %s43, 1
      %p239 = por %p237, %p238
      %p241 = scmp.ne.s32.totalorder %s226, %s240
      %p242 = scmp.eq.s32.totalorder %s43, 0
      %p243 = por %p241, %p242
      %s245 = sadd.s32 %s244, 1
      %p248 = scmp.eq.s32.totalorder %s37, 1
      %p249 = scmp.ne.s32.totalorder %s244, %s246
      %p250 = scmp.eq.s32.totalorder %s37, 0
      %p251 = por %p249, %p250
      %p252 = scmp.ne.s32.totalorder %s244, %s246
      %p253 = scmp.eq.s32.totalorder %s42, 1
      %p254 = por %p252, %p253
      %p255 = scmp.ne.s32.totalorder %s246, %s247
      %p256 = scmp.eq.s32.totalorder %s42, 0
      %p257 = por %p255, %p256
      %p258 = scmp.ne.s32.totalorder %s246, %s247
      %p259 = scmp.eq.s32.totalorder %s43, 1
      %p260 = por %p258, %p259
      %p262 = scmp.ne.s32.totalorder %s247, %s261
      %p263 = scmp.eq.s32.totalorder %s43, 0
      %p264 = por %p262, %p263
      %s266 = sadd.s32 %s265, 1
      %p269 = scmp.eq.s32.totalorder %s37, 1
      %p270 = scmp.ne.s32.totalorder %s265, %s267
      %p271 = scmp.eq.s32.totalorder %s37, 0
      %p272 = por %p270, %p271
      %p273 = scmp.ne.s32.totalorder %s265, %s267
      %p274 = scmp.eq.s32.totalorder %s42, 1
      %p275 = por %p273, %p274
      %p276 = scmp.ne.s32.totalorder %s267, %s268
      %p277 = scmp.eq.s32.totalorder %s42, 0
      %p278 = por %p276, %p277
      %p279 = scmp.ne.s32.totalorder %s267, %s268
      %p280 = scmp.eq.s32.totalorder %s43, 1
      %p281 = por %p279, %p280
      %p283 = scmp.ne.s32.totalorder %s268, %s282
      %p284 = scmp.eq.s32.totalorder %s43, 0
      %p285 = por %p283, %p284
      %s287 = sadd.s32 %s286, 1
      %p290 = scmp.eq.s32.totalorder %s37, 1
      %p291 = scmp.ne.s32.totalorder %s286, %s288
      %p292 = scmp.eq.s32.totalorder %s37, 0
      %p293 = por %p291, %p292
      %p294 = scmp.ne.s32.totalorder %s286, %s288
      %p295 = scmp.eq.s32.totalorder %s42, 1
      %p296 = por %p294, %p295
      %p297 = scmp.ne.s32.totalorder %s288, %s289
      %p298 = scmp.eq.s32.totalorder %s42, 0
      %p299 = por %p297, %p298
      %p300 = scmp.ne.s32.totalorder %s288, %s289
      %p301 = scmp.eq.s32.totalorder %s43, 1
      %p302 = por %p300, %p301
      %p304 = scmp.ne.s32.totalorder %s289, %s303
      %p305 = scmp.eq.s32.totalorder %s43, 0
      %p306 = por %p304, %p305
      %s308 = sadd.s32 %s307, 1
      %p311 = scmp.eq.s32.totalorder %s37, 1
      %p312 = scmp.ne.s32.totalorder %s307, %s309
      %p313 = scmp.eq.s32.totalorder %s37, 0
      %p314 = por %p312, %p313
      %p315 = scmp.ne.s32.totalorder %s307, %s309
      %p316 = scmp.eq.s32.totalorder %s42, 1
      %p317 = por %p315, %p316
      %p318 = scmp.ne.s32.totalorder %s309, %s310
      %p319 = scmp.eq.s32.totalorder %s42, 0
      %p320 = por %p318, %p319
      %p321 = scmp.ne.s32.totalorder %s309, %s310
      %p322 = scmp.eq.s32.totalorder %s43, 1
      %p323 = por %p321, %p322
      %p325 = scmp.ne.s32.totalorder %s310, %s324
      %p326 = scmp.eq.s32.totalorder %s43, 0
      %p327 = por %p325, %p326
      %s329 = sadd.s32 %s328, 1
      %p332 = scmp.eq.s32.totalorder %s37, 1
      %p333 = scmp.ne.s32.totalorder %s328, %s330
      %p334 = scmp.eq.s32.totalorder %s37, 0
      %p335 = por %p333, %p334
      %p336 = scmp.ne.s32.totalorder %s328, %s330
      %p337 = scmp.eq.s32.totalorder %s42, 1
      %p338 = por %p336, %p337
      %p339 = scmp.ne.s32.totalorder %s330, %s331
      %p340 = scmp.eq.s32.totalorder %s42, 0
      %p341 = por %p339, %p340
      %p342 = scmp.ne.s32.totalorder %s330, %s331
      %p343 = scmp.eq.s32.totalorder %s43, 1
      %p344 = por %p342, %p343
      %p346 = scmp.ne.s32.totalorder %s331, %s345
      %p347 = scmp.eq.s32.totalorder %s43, 0
      %p348 = por %p346, %p347
      %s350 = sadd.s32 %s349, 1
      %p353 = scmp.eq.s32.totalorder %s37, 1
      %p354 = scmp.ne.s32.totalorder %s349, %s351
      %p355 = scmp.eq.s32.totalorder %s37, 0
      %p356 = por %p354, %p355
      %p357 = scmp.ne.s32.totalorder %s349, %s351
      %p358 = scmp.eq.s32.totalorder %s42, 1
      %p359 = por %p357, %p358
      %p360 = scmp.ne.s32.totalorder %s351, %s352
      %p361 = scmp.eq.s32.totalorder %s42, 0
      %p362 = por %p360, %p361
      %p363 = scmp.ne.s32.totalorder %s351, %s352
      %p364 = scmp.eq.s32.totalorder %s43, 1
      %p365 = por %p363, %p364
      %p367 = scmp.ne.s32.totalorder %s352, %s366
      %p368 = scmp.eq.s32.totalorder %s43, 0
      %p369 = por %p367, %p368
      %s371 = sadd.s32 %s370, 1
      %p374 = scmp.eq.s32.totalorder %s37, 1
      %p375 = scmp.ne.s32.totalorder %s370, %s372
      %p376 = scmp.eq.s32.totalorder %s37, 0
      %p377 = por %p375, %p376
      %p378 = scmp.ne.s32.totalorder %s370, %s372
      %p379 = scmp.eq.s32.totalorder %s42, 1
      %p380 = por %p378, %p379
      %p381 = scmp.ne.s32.totalorder %s372, %s373
      %p382 = scmp.eq.s32.totalorder %s42, 0
      %p383 = por %p381, %p382
      %p384 = scmp.ne.s32.totalorder %s372, %s373
      %p385 = scmp.eq.s32.totalorder %s43, 1
      %p386 = por %p384, %p385
      %p388 = scmp.ne.s32.totalorder %s373, %s387
      %p389 = scmp.eq.s32.totalorder %s43, 0
      %p390 = por %p388, %p389
      %s392 = sadd.s32 %s391, 1
      %p395 = scmp.eq.s32.totalorder %s37, 1
      %p396 = scmp.ne.s32.totalorder %s391, %s393
      %p397 = scmp.eq.s32.totalorder %s37, 0
      %p398 = por %p396, %p397
      %p399 = scmp.ne.s32.totalorder %s391, %s393
      %p400 = scmp.eq.s32.totalorder %s42, 1
      %p401 = por %p399, %p400
      %p402 = scmp.ne.s32.totalorder %s393, %s394
      %p403 = scmp.eq.s32.totalorder %s42, 0
      %p404 = por %p402, %p403
      %p405 = scmp.ne.s32.totalorder %s393, %s394
      %p406 = scmp.eq.s32.totalorder %s43, 1
      %p407 = por %p405, %p406
      %p409 = scmp.ne.s32.totalorder %s394, %s408
      %p410 = scmp.eq.s32.totalorder %s43, 0
      %p411 = por %p409, %p410
      %s413 = sadd.s32 %s412, 1
      %p416 = scmp.eq.s32.totalorder %s37, 1
      %p417 = scmp.ne.s32.totalorder %s412, %s414
      %p418 = scmp.eq.s32.totalorder %s37, 0
      %p419 = por %p417, %p418
      %p420 = scmp.ne.s32.totalorder %s412, %s414
      %p421 = scmp.eq.s32.totalorder %s42, 1
      %p422 = por %p420, %p421
      %p423 = scmp.ne.s32.totalorder %s414, %s415
      %p424 = scmp.eq.s32.totalorder %s42, 0
      %p425 = por %p423, %p424
      %p426 = scmp.ne.s32.totalorder %s414, %s415
      %p427 = scmp.eq.s32.totalorder %s43, 1
      %p428 = por %p426, %p427
      %p430 = scmp.ne.s32.totalorder %s415, %s429
      %p431 = scmp.eq.s32.totalorder %s43, 0
      %p432 = por %p430, %p431
      %s433 = ssub.s32 %s37, %s44
      %p434 = scmp.eq.s32.totalorder %s433, 0
      %s436 = sadd.s32 %s435, 1
      %s437 = scalar_select %p434, %s435, %s436
      %p440 = pneg %p434
      %p441 = scmp.eq.s32.totalorder %s37, 1
      %p442 = por %p440, %p441
      %p443 = scmp.ne.s32.totalorder %s435, %s438
      %p444 = scmp.eq.s32.totalorder %s37, 0
      %p445 = por %p443, %p444
      %p446 = scmp.ne.s32.totalorder %s435, %s438
      %p447 = scmp.eq.s32.totalorder %s42, 1
      %p448 = por %p446, %p447
      %p449 = scmp.ne.s32.totalorder %s438, %s439
      %p450 = scmp.eq.s32.totalorder %s42, 0
      %p451 = por %p449, %p450
      %p452 = scmp.ne.s32.totalorder %s438, %s439
      %p453 = scmp.eq.s32.totalorder %s43, 1
      %p454 = por %p452, %p453
      %p456 = scmp.ne.s32.totalorder %s439, %s455
      %p457 = scmp.eq.s32.totalorder %s43, 0
      %p458 = por %p456, %p457
      %p459 = scmp.le.s32.totalorder 1, %s37
      %p460 = scmp.lt.s32.totalorder %s37, 3
      %p461 = pnand %p459, %p460
      %p462 = pneg %p461
      // Predicated region
      $region9: #{tpu_custom_call.1} parent=5 // pred_check
        _
      $region10: #{tpu_custom_call.1} parent=5 // pred_check_branch
        %464 = sbr.rel (%p461) target = $region12
      $region11: #{tpu_custom_call.1} parent=5 // pred_region
        %s465 = ssub.s32 %s37, 1
        // Predicated region
        $region13: #{tpu_custom_call.1} parent=11 // pred_check
          %p466 = pneg %p110
        $region14: #{tpu_custom_call.1} parent=11 // pred_check_branch
          %468 = sbr.rel (%p466) target = $region16
        $region15: #{tpu_custom_call.1} parent=11 // pred_region
          %470 = vsyncadd [#allocation6], 0
          %s471 = sshll.u32 %s2, 4
          %s472 = int_to_ptr.hbm [resolvable:$true] %s471
          %s473 = sshll.u32 [#allocation7], 4
          %s474 = int_to_ptr.vmem [resolvable:$true] %s473
          %479 = dma.hbm_to_vmem [thread:$0]  %s472, 256, %s474, [#allocation6], 64, 64, 4
        $region16: #{tpu_custom_call.1} parent=11 // pred_fallthru
          _
        // Predicated region
        $region17: #{tpu_custom_call.1} parent=11 // pred_check
          %p480 = pneg %p131
        $region18: #{tpu_custom_call.1} parent=11 // pred_check_branch
          %482 = sbr.rel (%p480) target = $region20
        $region19: #{tpu_custom_call.1} parent=11 // pred_region
          _
        $region20: #{tpu_custom_call.1} parent=11 // pred_fallthru
          _
        // Predicated region
        $region21: #{tpu_custom_call.1} parent=11 // pred_check
          %p483 = pneg %p152
        $region22: #{tpu_custom_call.1} parent=11 // pred_check_branch
          %485 = sbr.rel (%p483) target = $region24
        $region23: #{tpu_custom_call.1} parent=11 // pred_region
          %487 = vsyncadd [#allocation9], 0
          %s488 = sshll.u32 %s4, 4
          %s489 = int_to_ptr.hbm [resolvable:$true] %s488
          %s490 = sshll.u32 [#allocation8], 4
          %s491 = int_to_ptr.vmem [resolvable:$true] %s490
          %496 = dma.hbm_to_vmem [thread:$0]  %s489, 512, %s491, [#allocation9], 64, 64, 4
        $region24: #{tpu_custom_call.1} parent=11 // pred_fallthru
          _
        // Predicated region
        $region25: #{tpu_custom_call.1} parent=11 // pred_check
          %p497 = pneg %p173
        $region26: #{tpu_custom_call.1} parent=11 // pred_check_branch
          %499 = sbr.rel (%p497) target = $region28
        $region27: #{tpu_custom_call.1} parent=11 // pred_region
          _
        $region28: #{tpu_custom_call.1} parent=11 // pred_fallthru
          _
        // Predicated region
        $region29: #{tpu_custom_call.1} parent=11 // pred_check
          %p500 = pneg %p194
        $region30: #{tpu_custom_call.1} parent=11 // pred_check_branch
          %502 = sbr.rel (%p500) target = $region32
        $region31: #{tpu_custom_call.1} parent=11 // pred_region
          %504 = vsyncadd [#allocation9], 0
          %s505 = sshll.u32 %s6, 4
          %s506 = int_to_ptr.hbm [resolvable:$true] %s505
          %s507 = sshll.u32 [#allocation10], 4
          %s508 = int_to_ptr.vmem [resolvable:$true] %s507
          %513 = dma.hbm_to_vmem [thread:$0]  %s506, 256, %s508, [#allocation9], 64, 64, 4
        $region32: #{tpu_custom_call.1} parent=11 // pred_fallthru
          _
        // Predicated region
        $region33: #{tpu_custom_call.1} parent=11 // pred_check
          %p514 = pneg %p215
        $region34: #{tpu_custom_call.1} parent=11 // pred_check_branch
          %516 = sbr.rel (%p514) target = $region36
        $region35: #{tpu_custom_call.1} parent=11 // pred_region
          %518 = vsyncadd [#allocation12], 0
          %s519 = sshll.u32 %s7, 4
          %s520 = int_to_ptr.hbm [resolvable:$true] %s519
          %s521 = sshll.u32 [#allocation11], 4
          %s522 = int_to_ptr.vmem [resolvable:$true] %s521
          %527 = dma.hbm_to_vmem [thread:$0]  %s520, 256, %s522, [#allocation12], 64, 64, 4
        $region36: #{tpu_custom_call.1} parent=11 // pred_fallthru
          _
        // Predicated region
        $region37: #{tpu_custom_call.1} parent=11 // pred_check
          %p528 = pneg %p236
        $region38: #{tpu_custom_call.1} parent=11 // pred_check_branch
          %530 = sbr.rel (%p528) target = $region40
        $region39: #{tpu_custom_call.1} parent=11 // pred_region
          _
        $region40: #{tpu_custom_call.1} parent=11 // pred_fallthru
          _
        // Predicated region
        $region41: #{tpu_custom_call.1} parent=11 // pred_check
          %p531 = pneg %p257
        $region42: #{tpu_custom_call.1} parent=11 // pred_check_branch
          %533 = sbr.rel (%p531) target = $region44
        $region43: #{tpu_custom_call.1} parent=11 // pred_region
          %535 = vsyncadd [#allocation12], 0
          %s536 = sshll.u32 %s9, 4
          %s537 = int_to_ptr.hbm [resolvable:$true] %s536
          %s538 = sshll.u32 [#allocation13], 4
          %s539 = int_to_ptr.vmem [resolvable:$true] %s538
          %544 = dma.hbm_to_vmem [thread:$0]  %s537, 512, %s539, [#allocation12], 64, 64, 4
        $region44: #{tpu_custom_call.1} parent=11 // pred_fallthru
          _
        // Predicated region
        $region45: #{tpu_custom_call.1} parent=11 // pred_check
          %p545 = pneg %p278
        $region46: #{tpu_custom_call.1} parent=11 // pred_check_branch
          %547 = sbr.rel (%p545) target = $region48
        $region47: #{tpu_custom_call.1} parent=11 // pred_region
          _
        $region48: #{tpu_custom_call.1} parent=11 // pred_fallthru
          _
        // Predicated region
        $region49: #{tpu_custom_call.1} parent=11 // pred_check
          %p548 = pneg %p299
        $region50: #{tpu_custom_call.1} parent=11 // pred_check_branch
          %550 = sbr.rel (%p548) target = $region52
        $region51: #{tpu_custom_call.1} parent=11 // pred_region
          %552 = vsyncadd [#allocation15], 0
          %s553 = sshll.u32 %s11, 4
          %s554 = int_to_ptr.hbm [resolvable:$true] %s553
          %s555 = sshll.u32 [#allocation14], 4
          %s556 = int_to_ptr.vmem [resolvable:$true] %s555
          %561 = dma.hbm_to_vmem [thread:$0]  %s554, 512, %s556, [#allocation15], 64, 64, 4
        $region52: #{tpu_custom_call.1} parent=11 // pred_fallthru
          _
        // Predicated region
        $region53: #{tpu_custom_call.1} parent=11 // pred_check
          %p562 = pneg %p320
        $region54: #{tpu_custom_call.1} parent=11 // pred_check_branch
          %564 = sbr.rel (%p562) target = $region56
        $region55: #{tpu_custom_call.1} parent=11 // pred_region
          %566 = vsyncadd [#allocation15], 0
          %s567 = sshll.u32 %s12, 4
          %s568 = int_to_ptr.hbm [resolvable:$true] %s567
          %s569 = sshll.u32 [#allocation16], 4
          %s570 = int_to_ptr.vmem [resolvable:$true] %s569
          %575 = dma.hbm_to_vmem [thread:$0]  %s568, 512, %s570, [#allocation15], 64, 64, 4
        $region56: #{tpu_custom_call.1} parent=11 // pred_fallthru
          _
        // Predicated region
        $region57: #{tpu_custom_call.1} parent=11 // pred_check
          %p576 = pneg %p341
        $region58: #{tpu_custom_call.1} parent=11 // pred_check_branch
          %578 = sbr.rel (%p576) target = $region60
        $region59: #{tpu_custom_call.1} parent=11 // pred_region
          _
        $region60: #{tpu_custom_call.1} parent=11 // pred_fallthru
          _
        // Predicated region
        $region61: #{tpu_custom_call.1} parent=11 // pred_check
          %p579 = pneg %p362
        $region62: #{tpu_custom_call.1} parent=11 // pred_check_branch
          %581 = sbr.rel (%p579) target = $region64
        $region63: #{tpu_custom_call.1} parent=11 // pred_region
          %583 = vsyncadd [#allocation18], 0
          %s584 = sshll.u32 %s14, 4
          %s585 = int_to_ptr.hbm [resolvable:$true] %s584
          %s586 = sshll.u32 [#allocation17], 4
          %s587 = int_to_ptr.vmem [resolvable:$true] %s586
          %592 = dma.hbm_to_vmem [thread:$0]  %s585, 512, %s587, [#allocation18], 64, 64, 4
        $region64: #{tpu_custom_call.1} parent=11 // pred_fallthru
          _
        // Predicated region
        $region65: #{tpu_custom_call.1} parent=11 // pred_check
          %p593 = pneg %p383
        $region66: #{tpu_custom_call.1} parent=11 // pred_check_branch
          %595 = sbr.rel (%p593) target = $region68
        $region67: #{tpu_custom_call.1} parent=11 // pred_region
          _
        $region68: #{tpu_custom_call.1} parent=11 // pred_fallthru
          _
        // Predicated region
        $region69: #{tpu_custom_call.1} parent=11 // pred_check
          %p596 = pneg %p404
        $region70: #{tpu_custom_call.1} parent=11 // pred_check_branch
          %598 = sbr.rel (%p596) target = $region72
        $region71: #{tpu_custom_call.1} parent=11 // pred_region
          %600 = vsyncadd [#allocation18], 0
          %s601 = sshll.u32 %s16, 4
          %s602 = int_to_ptr.hbm [resolvable:$true] %s601
          %s603 = sshll.u32 [#allocation19], 4
          %s604 = int_to_ptr.vmem [resolvable:$true] %s603
          %609 = dma.hbm_to_vmem [thread:$0]  %s602, 512, %s604, [#allocation18], 64, 64, 4
        $region72: #{tpu_custom_call.1} parent=11 // pred_fallthru
          _
        // Predicated region
        $region73: #{tpu_custom_call.1} parent=11 // pred_check
          %p610 = pneg %p425
        $region74: #{tpu_custom_call.1} parent=11 // pred_check_branch
          %612 = sbr.rel (%p610) target = $region76
        $region75: #{tpu_custom_call.1} parent=11 // pred_region
          _
        $region76: #{tpu_custom_call.1} parent=11 // pred_fallthru
          _
      $region12: #{tpu_custom_call.1} parent=5 // pred_fallthru
        _
      %p613 = scmp.lt.s32.totalorder %s37, 2
      // Predicated region
      $region77: #{tpu_custom_call.1} parent=5 // pred_check
        %p614 = pneg %p613
      $region78: #{tpu_custom_call.1} parent=5 // pred_check_branch
        %616 = sbr.rel (%p614) target = $region80
      $region79: #{tpu_custom_call.1} parent=5 // pred_region
        // Predicated region
        $region81: #{tpu_custom_call.1} parent=79 // pred_check
          %p617 = pneg %p57
        $region82: #{tpu_custom_call.1} parent=79 // pred_check_branch
          %619 = sbr.rel (%p617) target = $region84
        $region83: #{tpu_custom_call.1} parent=79 // pred_region
          %s620 = sand.u32 %s47, 1
          %s621 = scalar_lea.sflag [#allocation3], %s620
          %s622 = sand.u32 %s47, 1
          %s623 = smul.addr %s622, 32
          %s624 = scalar_lea.vmem [#allocation2], %s623
          %s625 = smul.u32 8, %s37
          %627 = vsyncadd %s621, 0
          %s628 = smul.addr %s625, 4
          %s629 = scalar_lea.hbm %s0, %s628
          %s630 = sshll.u32 %s629, 4
          %s631 = int_to_ptr.hbm [resolvable:$true] %s630
          %s632 = sshll.u32 %s624, 4
          %s633 = int_to_ptr.vmem [resolvable:$true] %s632
          %638 = dma.hbm_to_vmem [thread:$0]  %s631, 512, %s633, %s621, 64, 64, 4
        $region84: #{tpu_custom_call.1} parent=79 // pred_fallthru
          _
        // Predicated region
        $region85: #{tpu_custom_call.1} parent=79 // pred_check
          %p639 = pneg %p83
        $region86: #{tpu_custom_call.1} parent=79 // pred_check_branch
          %641 = sbr.rel (%p639) target = $region88
        $region87: #{tpu_custom_call.1} parent=79 // pred_region
          %s642 = sand.u32 %s37, 1
          %s643 = scalar_lea.sflag [#allocation6], %s642
          %s644 = sand.u32 %s73, 1
          %s645 = smul.addr %s644, 32
          %s646 = scalar_lea.vmem [#allocation5], %s645
          %s647 = smul.u32 8, %s37
          %649 = vsyncadd %s643, 0
          %s650 = smul.addr %s647, 4
          %s651 = scalar_lea.hbm %s1, %s650
          %s652 = sshll.u32 %s651, 4
          %s653 = int_to_ptr.hbm [resolvable:$true] %s652
          %s654 = sshll.u32 %s646, 4
          %s655 = int_to_ptr.vmem [resolvable:$true] %s654
          %660 = dma.hbm_to_vmem [thread:$0]  %s653, 512, %s655, %s643, 64, 64, 4
        $region88: #{tpu_custom_call.1} parent=79 // pred_fallthru
          _
      $region80: #{tpu_custom_call.1} parent=5 // pred_fallthru
        _
      %p661 = scmp.le.s32.totalorder 1, %s37
      %p662 = scmp.lt.s32.totalorder %s37, 3
      %p663 = pnand %p661, %p662
      %p664 = pneg %p663
      // Predicated region
      $region89: #{tpu_custom_call.1} parent=5 // pred_check
        _
      $region90: #{tpu_custom_call.1} parent=5 // pred_check_branch
        %666 = sbr.rel (%p663) target = $region92
      $region91: #{tpu_custom_call.1} parent=5 // pred_region
        %s667 = ssub.s32 %s37, 1
        %s668 = sand.u32 %s50, 1
        %s669 = scalar_lea.sflag [#allocation3], %s668
        %s670 = sand.u32 %s50, 1
        %s671 = smul.addr %s670, 32
        %s672 = scalar_lea.vmem [#allocation2], %s671
        // Predicated region
        $region93: #{tpu_custom_call.1} parent=91 // pred_check
          %p673 = pneg %p63
        $region94: #{tpu_custom_call.1} parent=91 // pred_check_branch
          %675 = sbr.rel (%p673) target = $region96
        $region95: #{tpu_custom_call.1} parent=91 // pred_region
          %677 = dma.done %s669, 512
        $region96: #{tpu_custom_call.1} parent=91 // pred_fallthru
          _
        %s678 = sand.u32 %s42, 1
        %s679 = scalar_lea.sflag [#allocation6], %s678
        %s680 = sand.u32 %s76, 1
        %s681 = smul.addr %s680, 32
        %s682 = scalar_lea.vmem [#allocation5], %s681
        // Predicated region
        $region97: #{tpu_custom_call.1} parent=91 // pred_check
          %p683 = pneg %p89
        $region98: #{tpu_custom_call.1} parent=91 // pred_check_branch
          %685 = sbr.rel (%p683) target = $region100
        $region99: #{tpu_custom_call.1} parent=91 // pred_region
          %687 = dma.done %s679, 512
        $region100: #{tpu_custom_call.1} parent=91 // pred_fallthru
          _
        // Predicated region
        $region101: #{tpu_custom_call.1} parent=91 // pred_check
          %p688 = pneg %p110
        $region102: #{tpu_custom_call.1} parent=91 // pred_check_branch
          %690 = sbr.rel (%p688) target = $region104
        $region103: #{tpu_custom_call.1} parent=91 // pred_region
          %692 = dma.done [#allocation6], 256
        $region104: #{tpu_custom_call.1} parent=91 // pred_fallthru
          _
        // Predicated region
        $region105: #{tpu_custom_call.1} parent=91 // pred_check
          %p693 = pneg %p152
        $region106: #{tpu_custom_call.1} parent=91 // pred_check_branch
          %695 = sbr.rel (%p693) target = $region108
        $region107: #{tpu_custom_call.1} parent=91 // pred_region
          %697 = dma.done [#allocation9], 512
        $region108: #{tpu_custom_call.1} parent=91 // pred_fallthru
          _
        // Predicated region
        $region109: #{tpu_custom_call.1} parent=91 // pred_check
          %p698 = pneg %p194
        $region110: #{tpu_custom_call.1} parent=91 // pred_check_branch
          %700 = sbr.rel (%p698) target = $region112
        $region111: #{tpu_custom_call.1} parent=91 // pred_region
          %702 = dma.done [#allocation9], 256
        $region112: #{tpu_custom_call.1} parent=91 // pred_fallthru
          _
        // Predicated region
        $region113: #{tpu_custom_call.1} parent=91 // pred_check
          %p703 = pneg %p215
        $region114: #{tpu_custom_call.1} parent=91 // pred_check_branch
          %705 = sbr.rel (%p703) target = $region116
        $region115: #{tpu_custom_call.1} parent=91 // pred_region
          %707 = dma.done [#allocation12], 256
        $region116: #{tpu_custom_call.1} parent=91 // pred_fallthru
          _
        // Predicated region
        $region117: #{tpu_custom_call.1} parent=91 // pred_check
          %p708 = pneg %p257
        $region118: #{tpu_custom_call.1} parent=91 // pred_check_branch
          %710 = sbr.rel (%p708) target = $region120
        $region119: #{tpu_custom_call.1} parent=91 // pred_region
          %712 = dma.done [#allocation12], 512
        $region120: #{tpu_custom_call.1} parent=91 // pred_fallthru
          _
        // Predicated region
        $region121: #{tpu_custom_call.1} parent=91 // pred_check
          %p713 = pneg %p299
        $region122: #{tpu_custom_call.1} parent=91 // pred_check_branch
          %715 = sbr.rel (%p713) target = $region124
        $region123: #{tpu_custom_call.1} parent=91 // pred_region
          %717 = dma.done [#allocation15], 512
        $region124: #{tpu_custom_call.1} parent=91 // pred_fallthru
          _
        // Predicated region
        $region125: #{tpu_custom_call.1} parent=91 // pred_check
          %p718 = pneg %p320
        $region126: #{tpu_custom_call.1} parent=91 // pred_check_branch
          %720 = sbr.rel (%p718) target = $region128
        $region127: #{tpu_custom_call.1} parent=91 // pred_region
          %722 = dma.done [#allocation15], 512
        $region128: #{tpu_custom_call.1} parent=91 // pred_fallthru
          _
        // Predicated region
        $region129: #{tpu_custom_call.1} parent=91 // pred_check
          %p723 = pneg %p362
        $region130: #{tpu_custom_call.1} parent=91 // pred_check_branch
          %725 = sbr.rel (%p723) target = $region132
        $region131: #{tpu_custom_call.1} parent=91 // pred_region
          %727 = dma.done [#allocation18], 512
        $region132: #{tpu_custom_call.1} parent=91 // pred_fallthru
          _
        // Predicated region
        $region133: #{tpu_custom_call.1} parent=91 // pred_check
          %p728 = pneg %p404
        $region134: #{tpu_custom_call.1} parent=91 // pred_check_branch
          %730 = sbr.rel (%p728) target = $region136
        $region135: #{tpu_custom_call.1} parent=91 // pred_region
          %732 = dma.done [#allocation18], 512
        $region136: #{tpu_custom_call.1} parent=91 // pred_fallthru
          _
        %s733 = sand.u32 %s50, 1
        %s734 = scalar_lea.sflag [#allocation3], %s733
        %s735 = sand.u32 %s50, 1
        %s736 = smul.addr %s735, 32
        %s737 = scalar_lea.vmem [#allocation2], %s736
        %p738 = pneg %p63
        %p739 = pneg %p60
        %s740 = sand.u32 %s42, 1
        %s741 = scalar_lea.sflag [#allocation6], %s740
        %s742 = sand.u32 %s76, 1
        %s743 = smul.addr %s742, 32
        %s744 = scalar_lea.vmem [#allocation5], %s743
        %p745 = pneg %p89
        %p746 = pneg %p86
        %p747 = pneg %p110
        %p748 = pneg %p107
        %p749 = pneg %p131
        %p750 = pneg %p128
        %p751 = pneg %p152
        %p752 = pneg %p149
        %p753 = pneg %p173
        %p754 = pneg %p170
        %p755 = pneg %p194
        %p756 = pneg %p191
        %p757 = pneg %p215
        %p758 = pneg %p212
        %p759 = pneg %p236
        %p760 = pneg %p233
        %p761 = pneg %p257
        %p762 = pneg %p254
        %p763 = pneg %p278
        %p764 = pneg %p275
        %p765 = pneg %p299
        %p766 = pneg %p296
        %p767 = pneg %p320
        %p768 = pneg %p317
        %p769 = pneg %p341
        %p770 = pneg %p338
        %p771 = pneg %p362
        %p772 = pneg %p359
        %p773 = pneg %p383
        %p774 = pneg %p380
        %p775 = pneg %p404
        %p776 = pneg %p401
        %p777 = pneg %p425
        %p778 = pneg %p422
        %p779 = pneg %p451
        %p780 = pneg %p448
        %s781 = sand.u32 %s438, 1
        %s782 = scalar_lea.sflag [#allocation4], %s781
        %s783 = sand.u32 %s438, 1
        %s784 = smul.addr %s783, 8
        %s785 = scalar_lea.vmem [#allocation20], %s784
        %s786 = smul.u32 8, %s42
        %s787 = smul.u32 8, %s42
        %v789 = vld [vmem:[%s672] sm:$0xf]
        %v790 = vld [vmem:[%s672 + $0x4] sm:$0xf]
        %v791 = vld [vmem:[%s672 + $0x8] sm:$0xf]
        %v792 = vld [vmem:[%s672 + $0xc] sm:$0xf]
        %v793 = vld [vmem:[%s672 + $0x10] sm:$0xf]
        %v794 = vld [vmem:[%s672 + $0x14] sm:$0xf]
        %v795 = vld [vmem:[%s672 + $0x18] sm:$0xf]
        %v796 = vld [vmem:[%s672 + $0x1c] sm:$0xf]
        %v797 = vld [vmem:[%s682] sm:$0xf]
        %v798 = vld [vmem:[%s682 + $0x4] sm:$0xf]
        %v799 = vld [vmem:[%s682 + $0x8] sm:$0xf]
        %v800 = vld [vmem:[%s682 + $0xc] sm:$0xf]
        %v801 = vld [vmem:[%s682 + $0x10] sm:$0xf]
        %v802 = vld [vmem:[%s682 + $0x14] sm:$0xf]
        %v803 = vld [vmem:[%s682 + $0x18] sm:$0xf]
        %v804 = vld [vmem:[%s682 + $0x1c] sm:$0xf]
        %v805 = vld [vmem:[#allocation7] sm:$0xf]
        %v806 = vld [vmem:[#allocation7 + $0x4] sm:$0xf]
        %v807 = vld [vmem:[#allocation7 + $0x8] sm:$0xf]
        %v808 = vld [vmem:[#allocation7 + $0xc] sm:$0xf]
        %v809 = vld [vmem:[%s3] sm:$0x1]
        %v810 = vld [vmem:[#allocation8] sm:$0xf]
        %v811 = vld [vmem:[#allocation8 + $0x4] sm:$0xf]
        %v812 = vld [vmem:[#allocation8 + $0x8] sm:$0xf]
        %v813 = vld [vmem:[#allocation8 + $0xc] sm:$0xf]
        %v814 = vld [vmem:[#allocation8 + $0x10] sm:$0xf]
        %v815 = vld [vmem:[#allocation8 + $0x14] sm:$0xf]
        %v816 = vld [vmem:[#allocation8 + $0x18] sm:$0xf]
        %v817 = vld [vmem:[#allocation8 + $0x1c] sm:$0xf]
        %v818 = vld [vmem:[%s5] sm:$0x1]
        %v819 = vld [vmem:[#allocation10] sm:$0xf]
        %v820 = vld [vmem:[#allocation10 + $0x4] sm:$0xf]
        %v821 = vld [vmem:[#allocation10 + $0x8] sm:$0xf]
        %v822 = vld [vmem:[#allocation10 + $0xc] sm:$0xf]
        %v823 = vld [vmem:[#allocation11] sm:$0xf]
        %v824 = vld [vmem:[#allocation11 + $0x4] sm:$0xf]
        %v825 = vld [vmem:[#allocation11 + $0x8] sm:$0xf]
        %v826 = vld [vmem:[#allocation11 + $0xc] sm:$0xf]
        %v827 = vld [vmem:[%s8] sm:$0x1]
        %v828 = vld [vmem:[#allocation13] sm:$0xf]
        %v829 = vld [vmem:[#allocation13 + $0x4] sm:$0xf]
        %v830 = vld [vmem:[#allocation13 + $0x8] sm:$0xf]
        %v831 = vld [vmem:[#allocation13 + $0xc] sm:$0xf]
        %v832 = vld [vmem:[#allocation13 + $0x10] sm:$0xf]
        %v833 = vld [vmem:[#allocation13 + $0x14] sm:$0xf]
        %v834 = vld [vmem:[#allocation13 + $0x18] sm:$0xf]
        %v835 = vld [vmem:[#allocation13 + $0x1c] sm:$0xf]
        %v836 = vld [vmem:[%s10] sm:$0x1]
        %v837 = vld [vmem:[#allocation14] sm:$0xf]
        %v838 = vld [vmem:[#allocation14 + $0x4] sm:$0xf]
        %v839 = vld [vmem:[#allocation14 + $0x8] sm:$0xf]
        %v840 = vld [vmem:[#allocation14 + $0xc] sm:$0xf]
        %v841 = vld [vmem:[#allocation14 + $0x10] sm:$0xf]
        %v842 = vld [vmem:[#allocation14 + $0x14] sm:$0xf]
        %v843 = vld [vmem:[#allocation14 + $0x18] sm:$0xf]
        %v844 = vld [vmem:[#allocation14 + $0x1c] sm:$0xf]
        %v845 = vld [vmem:[#allocation16] sm:$0xf]
        %v846 = vld [vmem:[#allocation16 + $0x4] sm:$0xf]
        %v847 = vld [vmem:[#allocation16 + $0x8] sm:$0xf]
        %v848 = vld [vmem:[#allocation16 + $0xc] sm:$0xf]
        %v849 = vld [vmem:[#allocation16 + $0x10] sm:$0xf]
        %v850 = vld [vmem:[#allocation16 + $0x14] sm:$0xf]
        %v851 = vld [vmem:[#allocation16 + $0x18] sm:$0xf]
        %v852 = vld [vmem:[#allocation16 + $0x1c] sm:$0xf]
        %v853 = vld [vmem:[%s13] sm:$0x1]
        %v854 = vld [vmem:[#allocation17] sm:$0xf]
        %v855 = vld [vmem:[#allocation17 + $0x4] sm:$0xf]
        %v856 = vld [vmem:[#allocation17 + $0x8] sm:$0xf]
        %v857 = vld [vmem:[#allocation17 + $0xc] sm:$0xf]
        %v858 = vld [vmem:[#allocation17 + $0x10] sm:$0xf]
        %v859 = vld [vmem:[#allocation17 + $0x14] sm:$0xf]
        %v860 = vld [vmem:[#allocation17 + $0x18] sm:$0xf]
        %v861 = vld [vmem:[#allocation17 + $0x1c] sm:$0xf]
        %v862 = vld [vmem:[%s15] sm:$0x1]
        %v863 = vld [vmem:[#allocation19] sm:$0xf]
        %v864 = vld [vmem:[#allocation19 + $0x4] sm:$0xf]
        %v865 = vld [vmem:[#allocation19 + $0x8] sm:$0xf]
        %v866 = vld [vmem:[#allocation19 + $0xc] sm:$0xf]
        %v867 = vld [vmem:[#allocation19 + $0x10] sm:$0xf]
        %v868 = vld [vmem:[#allocation19 + $0x14] sm:$0xf]
        %v869 = vld [vmem:[#allocation19 + $0x18] sm:$0xf]
        %v870 = vld [vmem:[#allocation19 + $0x1c] sm:$0xf]
        %v871 = vld [vmem:[%s17] sm:$0x1]
        %v880 = vunpack.c.l.b16 %v789
        %v881 = vunpack.c.l.b16 %v790
        %v882 = vunpack.c.l.b16 %v791
        %v883 = vunpack.c.l.b16 %v792
        %v884 = vunpack.c.l.b16 %v793
        %v885 = vunpack.c.l.b16 %v794
        %v886 = vunpack.c.l.b16 %v795
        %v887 = vunpack.c.l.b16 %v796
        %v888 = vpack.c.b16 %v881, %v880
        %v889 = vpack.c.b16 %v883, %v882
        %v890 = vpack.c.b16 %v885, %v884
        %v891 = vpack.c.b16 %v887, %v886
        %v900 = vunpack.c.l.b16 %v797
        %v901 = vunpack.c.l.b16 %v798
        %v902 = vunpack.c.l.b16 %v799
        %v903 = vunpack.c.l.b16 %v800
        %v904 = vunpack.c.l.b16 %v801
        %v905 = vunpack.c.l.b16 %v802
        %v906 = vunpack.c.l.b16 %v803
        %v907 = vunpack.c.l.b16 %v804
        %v908 = vpack.c.b16 %v901, %v900
        %v909 = vpack.c.b16 %v903, %v902
        %v910 = vpack.c.b16 %v905, %v904
        %v911 = vpack.c.b16 %v907, %v906
        %v913 = vperm.slane %v809, 0
        %v919 = vunpack.c.l.b16 %v805
        %v920 = vunpack.c.l.b16 %v806
        %v921 = vunpack.c.l.b16 %v807
        %v922 = vunpack.c.l.b16 %v808
        %v923 = vpack.c.b16 %v920, %v919
        %v924 = vpack.c.b16 %v922, %v921
        %vm927 = vcmask 261120
        %v929 = vsel %vm927, %v888, 0
        %v932 = vsel %vm927, %v889, 0
        %v935 = vsel %vm927, %v890, 0
        %v938 = vsel %vm927, %v891, 0
        %v941 = vsel %vm927, %v908, 0
        %v944 = vsel %vm927, %v909, 0
        %v947 = vsel %vm927, %v910, 0
        %v950 = vsel %vm927, %v911, 0
        %952 = vmatpush.bf16.msra.mxu0 0
        %953 = vmatpush.bf16.msra.mxu0 0
        %954 = vmatpush.bf16.msra.mxu0 0
        %955 = vmatpush.bf16.msra.mxu0 0
        %956 = vmatpush.bf16.msra.mxu0 0
        %957 = vmatpush.bf16.msra.mxu0 0
        %958 = vmatpush.bf16.msra.mxu0 %v924
        %959 = vmatpush.bf16.msra.mxu0 %v923
        %960 = vmatmul.bf16.gmra.mxu0 %v929
        %v961 = vpop.f32.mrf.mxu0
        %v962 = vadd.f32 %v913, %v961
        %v963 = vpop.f32.mrf.mxu0
        %v964 = vadd.f32 %v913, %v963
        %965 = vmatmul.bf16.gmra.mxu0 %v932
        %v966 = vpop.f32.mrf.mxu0
        %v967 = vadd.f32 %v913, %v966
        %v968 = vpop.f32.mrf.mxu0
        %v969 = vadd.f32 %v913, %v968
        %970 = vmatmul.bf16.gmra.mxu0 %v935
        %v971 = vpop.f32.mrf.mxu0
        %v972 = vadd.f32 %v913, %v971
        %v973 = vpop.f32.mrf.mxu0
        %v974 = vadd.f32 %v913, %v973
        %975 = vmatmul.bf16.gmra.mxu0 %v938
        %v976 = vpop.f32.mrf.mxu0
        %v977 = vadd.f32 %v913, %v976
        %v978 = vpop.f32.mrf.mxu0
        %v979 = vadd.f32 %v913, %v978
        %980 = vmatmul.bf16.gmra.mxu0 %v941
        %v981 = vpop.f32.mrf.mxu0
        %v982 = vadd.f32 %v913, %v981
        %v983 = vpop.f32.mrf.mxu0
        %v984 = vadd.f32 %v913, %v983
        %985 = vmatmul.bf16.gmra.mxu0 %v944
        %v986 = vpop.f32.mrf.mxu0
        %v987 = vadd.f32 %v913, %v986
        %v988 = vpop.f32.mrf.mxu0
        %v989 = vadd.f32 %v913, %v988
        %990 = vmatmul.bf16.gmra.mxu0 %v947
        %v991 = vpop.f32.mrf.mxu0
        %v992 = vadd.f32 %v913, %v991
        %v993 = vpop.f32.mrf.mxu0
        %v994 = vadd.f32 %v913, %v993
        %995 = vmatmul.bf16.gmra.mxu0 %v950
        %v996 = vpop.f32.mrf.mxu0
        %v997 = vadd.f32 %v913, %v996
        %v998 = vpop.f32.mrf.mxu0
        %v999 = vadd.f32 %v913, %v998
        %1000 = vdwg.mxu0
        %v1001 = vmax.f32 %v962, 0.0
        %v1002 = vmax.f32 %v964, 0.0
        %v1003 = vmax.f32 %v967, 0.0
        %v1004 = vmax.f32 %v969, 0.0
        %v1005 = vmax.f32 %v972, 0.0
        %v1006 = vmax.f32 %v974, 0.0
        %v1007 = vmax.f32 %v977, 0.0
        %v1008 = vmax.f32 %v979, 0.0
        %v1009 = vmax.f32 %v982, 0.0
        %v1010 = vmax.f32 %v984, 0.0
        %v1011 = vmax.f32 %v987, 0.0
        %v1012 = vmax.f32 %v989, 0.0
        %v1013 = vmax.f32 %v992, 0.0
        %v1014 = vmax.f32 %v994, 0.0
        %v1015 = vmax.f32 %v997, 0.0
        %v1016 = vmax.f32 %v999, 0.0
        %v1017 = vpack.c.bf16 %v1002, %v1001
        %v1018 = vpack.c.bf16 %v1004, %v1003
        %v1019 = vpack.c.bf16 %v1006, %v1005
        %v1020 = vpack.c.bf16 %v1008, %v1007
        %v1021 = vpack.c.bf16 %v1010, %v1009
        %v1022 = vpack.c.bf16 %v1012, %v1011
        %v1023 = vpack.c.bf16 %v1014, %v1013
        %v1024 = vpack.c.bf16 %v1016, %v1015
        %v1026 = vperm.slane %v818, 0
        %v1036 = vunpack.c.l.b16 %v810
        %v1037 = vunpack.c.l.b16 %v811
        %v1038 = vunpack.c.l.b16 %v812
        %v1039 = vunpack.c.l.b16 %v813
        %v1040 = vunpack.c.l.b16 %v814
        %v1041 = vunpack.c.l.b16 %v815
        %v1042 = vunpack.c.l.b16 %v816
        %v1043 = vunpack.c.l.b16 %v817
        %v1044 = vpack.c.b16 %v1037, %v1036
        %v1045 = vpack.c.b16 %v1039, %v1038
        %v1046 = vpack.c.b16 %v1041, %v1040
        %v1047 = vpack.c.b16 %v1043, %v1042
        %vm1052 = vcmask 523264
        %v1054 = vsel %vm1052, %v1017, 0
        %v1057 = vsel %vm1052, %v1018, 0
        %v1060 = vsel %vm1052, %v1019, 0
        %v1063 = vsel %vm1052, %v1020, 0
        %v1066 = vsel %vm1052, %v1021, 0
        %v1069 = vsel %vm1052, %v1022, 0
        %v1072 = vsel %vm1052, %v1023, 0
        %v1075 = vsel %vm1052, %v1024, 0
        %1077 = vmatpush.bf16.msra.mxu0 0
        %1078 = vmatpush.bf16.msra.mxu0 0
        %1079 = vmatpush.bf16.msra.mxu0 0
        %1080 = vmatpush.bf16.msra.mxu0 0
        %1081 = vmatpush.bf16.msra.mxu0 %v1047
        %1082 = vmatpush.bf16.msra.mxu0 %v1046
        %1083 = vmatpush.bf16.msra.mxu0 %v1045
        %1084 = vmatpush.bf16.msra.mxu0 %v1044
        %1085 = vmatmul.bf16.gmra.mxu0 %v1054
        %v1086 = vpop.f32.mrf.mxu0
        %v1087 = vadd.f32 %v1026, %v1086
        %v1088 = vpop.f32.mrf.mxu0
        %v1089 = vadd.f32 %v1026, %v1088
        %1090 = vmatmul.bf16.gmra.mxu0 %v1057
        %v1091 = vpop.f32.mrf.mxu0
        %v1092 = vadd.f32 %v1026, %v1091
        %v1093 = vpop.f32.mrf.mxu0
        %v1094 = vadd.f32 %v1026, %v1093
        %1095 = vmatmul.bf16.gmra.mxu0 %v1060
        %v1096 = vpop.f32.mrf.mxu0
        %v1097 = vadd.f32 %v1026, %v1096
        %v1098 = vpop.f32.mrf.mxu0
        %v1099 = vadd.f32 %v1026, %v1098
        %1100 = vmatmul.bf16.gmra.mxu0 %v1063
        %v1101 = vpop.f32.mrf.mxu0
        %v1102 = vadd.f32 %v1026, %v1101
        %v1103 = vpop.f32.mrf.mxu0
        %v1104 = vadd.f32 %v1026, %v1103
        %1105 = vmatmul.bf16.gmra.mxu0 %v1066
        %v1106 = vpop.f32.mrf.mxu0
        %v1107 = vadd.f32 %v1026, %v1106
        %v1108 = vpop.f32.mrf.mxu0
        %v1109 = vadd.f32 %v1026, %v1108
        %1110 = vmatmul.bf16.gmra.mxu0 %v1069
        %v1111 = vpop.f32.mrf.mxu0
        %v1112 = vadd.f32 %v1026, %v1111
        %v1113 = vpop.f32.mrf.mxu0
        %v1114 = vadd.f32 %v1026, %v1113
        %1115 = vmatmul.bf16.gmra.mxu0 %v1072
        %v1116 = vpop.f32.mrf.mxu0
        %v1117 = vadd.f32 %v1026, %v1116
        %v1118 = vpop.f32.mrf.mxu0
        %v1119 = vadd.f32 %v1026, %v1118
        %1120 = vmatmul.bf16.gmra.mxu0 %v1075
        %v1121 = vpop.f32.mrf.mxu0
        %v1122 = vadd.f32 %v1026, %v1121
        %v1123 = vpop.f32.mrf.mxu0
        %v1124 = vadd.f32 %v1026, %v1123
        %1125 = vdwg.mxu0
        %v1126 = vmax.f32 %v1087, 0.0
        %v1127 = vmax.f32 %v1089, 0.0
        %v1128 = vmax.f32 %v1092, 0.0
        %v1129 = vmax.f32 %v1094, 0.0
        %v1130 = vmax.f32 %v1097, 0.0
        %v1131 = vmax.f32 %v1099, 0.0
        %v1132 = vmax.f32 %v1102, 0.0
        %v1133 = vmax.f32 %v1104, 0.0
        %v1134 = vmax.f32 %v1107, 0.0
        %v1135 = vmax.f32 %v1109, 0.0
        %v1136 = vmax.f32 %v1112, 0.0
        %v1137 = vmax.f32 %v1114, 0.0
        %v1138 = vmax.f32 %v1117, 0.0
        %v1139 = vmax.f32 %v1119, 0.0
        %v1140 = vmax.f32 %v1122, 0.0
        %v1141 = vmax.f32 %v1124, 0.0
        %v1142 = vpack.c.bf16 %v1126, %v1126
        %v1143 = vpack.c.bf16 %v1127, %v1127
        %v1144 = vpack.c.bf16 %v1128, %v1128
        %v1145 = vpack.c.bf16 %v1129, %v1129
        %v1146 = vpack.c.bf16 %v1130, %v1130
        %v1147 = vpack.c.bf16 %v1131, %v1131
        %v1148 = vpack.c.bf16 %v1132, %v1132
        %v1149 = vpack.c.bf16 %v1133, %v1133
        %v1150 = vpack.c.bf16 %v1134, %v1134
        %v1151 = vpack.c.bf16 %v1135, %v1135
        %v1152 = vpack.c.bf16 %v1136, %v1136
        %v1153 = vpack.c.bf16 %v1137, %v1137
        %v1154 = vpack.c.bf16 %v1138, %v1138
        %v1155 = vpack.c.bf16 %v1139, %v1139
        %v1156 = vpack.c.bf16 %v1140, %v1140
        %v1157 = vpack.c.bf16 %v1141, %v1141
        %v1159 = vsel %vm1052, %v1142, 0
        %v1162 = vsel %vm1052, %v1150, 0
        %1164 = vmatpush.bf16.xpose.msra.mxu0 0
        %1165 = vmatpush.bf16.xpose.msra.mxu0 0
        %1166 = vmatpush.bf16.xpose.msra.mxu0 0
        %1167 = vmatpush.bf16.xpose.msra.mxu0 0
        %1168 = vmatpush.bf16.xpose.msra.mxu0 0
        %1169 = vmatpush.bf16.xpose.msra.mxu0 0
        %1170 = vmatpush.bf16.xpose.msra.mxu0 0
        %1171 = vmatpush.bf16.xpose.msra.mxu0 %v1162
        %1172 = vmatmul.bf16.gmra.mxu0 %v1159
        %v1173 = vpop.f32.mrf.mxu0
        %v1174 = vadd.f32 0.0, %v1173
        %v1175 = vpop.f32.mrf.mxu0
        %1176 = vdwg.mxu0
        %v1178 = vsel %vm1052, %v1143, 0
        %v1181 = vsel %vm1052, %v1151, 0
        %1183 = vmatpush.bf16.xpose.msra.mxu0 0
        %1184 = vmatpush.bf16.xpose.msra.mxu0 0
        %1185 = vmatpush.bf16.xpose.msra.mxu0 0
        %1186 = vmatpush.bf16.xpose.msra.mxu0 0
        %1187 = vmatpush.bf16.xpose.msra.mxu0 0
        %1188 = vmatpush.bf16.xpose.msra.mxu0 0
        %1189 = vmatpush.bf16.xpose.msra.mxu0 0
        %1190 = vmatpush.bf16.xpose.msra.mxu0 %v1181
        %1191 = vmatmul.bf16.gmra.mxu0 %v1178
        %v1192 = vpop.f32.mrf.mxu0
        %v1193 = vadd.f32 0.0, %v1192
        %v1194 = vpop.f32.mrf.mxu0
        %1195 = vdwg.mxu0
        %v1197 = vsel %vm1052, %v1144, 0
        %v1200 = vsel %vm1052, %v1152, 0
        %1202 = vmatpush.bf16.xpose.msra.mxu0 0
        %1203 = vmatpush.bf16.xpose.msra.mxu0 0
        %1204 = vmatpush.bf16.xpose.msra.mxu0 0
        %1205 = vmatpush.bf16.xpose.msra.mxu0 0
        %1206 = vmatpush.bf16.xpose.msra.mxu0 0
        %1207 = vmatpush.bf16.xpose.msra.mxu0 0
        %1208 = vmatpush.bf16.xpose.msra.mxu0 0
        %1209 = vmatpush.bf16.xpose.msra.mxu0 %v1200
        %1210 = vmatmul.bf16.gmra.mxu0 %v1197
        %v1211 = vpop.f32.mrf.mxu0
        %v1212 = vadd.f32 0.0, %v1211
        %v1213 = vpop.f32.mrf.mxu0
        %1214 = vdwg.mxu0
        %v1216 = vsel %vm1052, %v1145, 0
        %v1219 = vsel %vm1052, %v1153, 0
        %1221 = vmatpush.bf16.xpose.msra.mxu0 0
        %1222 = vmatpush.bf16.xpose.msra.mxu0 0
        %1223 = vmatpush.bf16.xpose.msra.mxu0 0
        %1224 = vmatpush.bf16.xpose.msra.mxu0 0
        %1225 = vmatpush.bf16.xpose.msra.mxu0 0
        %1226 = vmatpush.bf16.xpose.msra.mxu0 0
        %1227 = vmatpush.bf16.xpose.msra.mxu0 0
        %1228 = vmatpush.bf16.xpose.msra.mxu0 %v1219
        %1229 = vmatmul.bf16.gmra.mxu0 %v1216
        %v1230 = vpop.f32.mrf.mxu0
        %v1231 = vadd.f32 0.0, %v1230
        %v1232 = vpop.f32.mrf.mxu0
        %1233 = vdwg.mxu0
        %v1235 = vsel %vm1052, %v1146, 0
        %v1238 = vsel %vm1052, %v1154, 0
        %1240 = vmatpush.bf16.xpose.msra.mxu0 0
        %1241 = vmatpush.bf16.xpose.msra.mxu0 0
        %1242 = vmatpush.bf16.xpose.msra.mxu0 0
        %1243 = vmatpush.bf16.xpose.msra.mxu0 0
        %1244 = vmatpush.bf16.xpose.msra.mxu0 0
        %1245 = vmatpush.bf16.xpose.msra.mxu0 0
        %1246 = vmatpush.bf16.xpose.msra.mxu0 0
        %1247 = vmatpush.bf16.xpose.msra.mxu0 %v1238
        %1248 = vmatmul.bf16.gmra.mxu0 %v1235
        %v1249 = vpop.f32.mrf.mxu0
        %v1250 = vadd.f32 0.0, %v1249
        %v1251 = vpop.f32.mrf.mxu0
        %1252 = vdwg.mxu0
        %v1254 = vsel %vm1052, %v1147, 0
        %v1257 = vsel %vm1052, %v1155, 0
        %1259 = vmatpush.bf16.xpose.msra.mxu0 0
        %1260 = vmatpush.bf16.xpose.msra.mxu0 0
        %1261 = vmatpush.bf16.xpose.msra.mxu0 0
        %1262 = vmatpush.bf16.xpose.msra.mxu0 0
        %1263 = vmatpush.bf16.xpose.msra.mxu0 0
        %1264 = vmatpush.bf16.xpose.msra.mxu0 0
        %1265 = vmatpush.bf16.xpose.msra.mxu0 0
        %1266 = vmatpush.bf16.xpose.msra.mxu0 %v1257
        %1267 = vmatmul.bf16.gmra.mxu0 %v1254
        %v1268 = vpop.f32.mrf.mxu0
        %v1269 = vadd.f32 0.0, %v1268
        %v1270 = vpop.f32.mrf.mxu0
        %1271 = vdwg.mxu0
        %v1273 = vsel %vm1052, %v1148, 0
        %v1276 = vsel %vm1052, %v1156, 0
        %1278 = vmatpush.bf16.xpose.msra.mxu0 0
        %1279 = vmatpush.bf16.xpose.msra.mxu0 0
        %1280 = vmatpush.bf16.xpose.msra.mxu0 0
        %1281 = vmatpush.bf16.xpose.msra.mxu0 0
        %1282 = vmatpush.bf16.xpose.msra.mxu0 0
        %1283 = vmatpush.bf16.xpose.msra.mxu0 0
        %1284 = vmatpush.bf16.xpose.msra.mxu0 0
        %1285 = vmatpush.bf16.xpose.msra.mxu0 %v1276
        %1286 = vmatmul.bf16.gmra.mxu0 %v1273
        %v1287 = vpop.f32.mrf.mxu0
        %v1288 = vadd.f32 0.0, %v1287
        %v1289 = vpop.f32.mrf.mxu0
        %1290 = vdwg.mxu0
        %v1292 = vsel %vm1052, %v1149, 0
        %v1295 = vsel %vm1052, %v1157, 0
        %1297 = vmatpush.bf16.xpose.msra.mxu0 0
        %1298 = vmatpush.bf16.xpose.msra.mxu0 0
        %1299 = vmatpush.bf16.xpose.msra.mxu0 0
        %1300 = vmatpush.bf16.xpose.msra.mxu0 0
        %1301 = vmatpush.bf16.xpose.msra.mxu0 0
        %1302 = vmatpush.bf16.xpose.msra.mxu0 0
        %1303 = vmatpush.bf16.xpose.msra.mxu0 0
        %1304 = vmatpush.bf16.xpose.msra.mxu0 %v1295
        %1305 = vmatmul.bf16.gmra.mxu0 %v1292
        %v1306 = vpop.f32.mrf.mxu0
        %v1307 = vadd.f32 0.0, %v1306
        %v1308 = vpop.f32.mrf.mxu0
        %1309 = vdwg.mxu0
        %vm1310 = vcmask 64512
        %v1311 = vsel %vm1310, %v1174, -inf
        %1312 = vmax.xlane.f32.xlu0 %v1311
        %v1313 = vpop.xlane.xlu0 %1312
        %v1314 = vsel %vm1310, %v1193, -inf
        %1315 = vmax.xlane.f32.xlu0 %v1314
        %v1316 = vpop.xlane.xlu0 %1315
        %v1317 = vsel %vm1310, %v1212, -inf
        %1318 = vmax.xlane.f32.xlu0 %v1317
        %v1319 = vpop.xlane.xlu0 %1318
        %v1320 = vsel %vm1310, %v1231, -inf
        %1321 = vmax.xlane.f32.xlu0 %v1320
        %v1322 = vpop.xlane.xlu0 %1321
        %v1323 = vsel %vm1310, %v1250, -inf
        %1324 = vmax.xlane.f32.xlu0 %v1323
        %v1325 = vpop.xlane.xlu0 %1324
        %v1326 = vsel %vm1310, %v1269, -inf
        %1327 = vmax.xlane.f32.xlu0 %v1326
        %v1328 = vpop.xlane.xlu0 %1327
        %v1329 = vsel %vm1310, %v1288, -inf
        %1330 = vmax.xlane.f32.xlu0 %v1329
        %v1331 = vpop.xlane.xlu0 %1330
        %v1332 = vsel %vm1310, %v1307, -inf
        %1333 = vmax.xlane.f32.xlu0 %v1332
        %v1334 = vpop.xlane.xlu0 %1333
        %v1335 = vsub.f32 %v1174, %v1313
        %v1336 = vsub.f32 %v1193, %v1316
        %v1337 = vsub.f32 %v1212, %v1319
        %v1338 = vsub.f32 %v1231, %v1322
        %v1339 = vsub.f32 %v1250, %v1325
        %v1340 = vsub.f32 %v1269, %v1328
        %v1341 = vsub.f32 %v1288, %v1331
        %v1342 = vsub.f32 %v1307, %v1334
        %v1343 = vmul.f32 %v1335, 1.442695
        %v1344 = vpow.pop %v1343
        %v1345 = vmul.f32 %v1336, 1.442695
        %v1346 = vpow.pop %v1345
        %v1347 = vmul.f32 %v1337, 1.442695
        %v1348 = vpow.pop %v1347
        %v1349 = vmul.f32 %v1338, 1.442695
        %v1350 = vpow.pop %v1349
        %v1351 = vmul.f32 %v1339, 1.442695
        %v1352 = vpow.pop %v1351
        %v1353 = vmul.f32 %v1340, 1.442695
        %v1354 = vpow.pop %v1353
        %v1355 = vmul.f32 %v1341, 1.442695
        %v1356 = vpow.pop %v1355
        %v1357 = vmul.f32 %v1342, 1.442695
        %v1358 = vpow.pop %v1357
        %v1359 = vsel %vm1310, %v1344, 0.0
        %1360 = vadd.xlane.f32.xlu0 %v1359
        %v1361 = vpop.xlane.xlu0 %1360
        %v1362 = vsel %vm1310, %v1346, 0.0
        %1363 = vadd.xlane.f32.xlu0 %v1362
        %v1364 = vpop.xlane.xlu0 %1363
        %v1365 = vsel %vm1310, %v1348, 0.0
        %1366 = vadd.xlane.f32.xlu0 %v1365
        %v1367 = vpop.xlane.xlu0 %1366
        %v1368 = vsel %vm1310, %v1350, 0.0
        %1369 = vadd.xlane.f32.xlu0 %v1368
        %v1370 = vpop.xlane.xlu0 %1369
        %v1371 = vsel %vm1310, %v1352, 0.0
        %1372 = vadd.xlane.f32.xlu0 %v1371
        %v1373 = vpop.xlane.xlu0 %1372
        %v1374 = vsel %vm1310, %v1354, 0.0
        %1375 = vadd.xlane.f32.xlu0 %v1374
        %v1376 = vpop.xlane.xlu0 %1375
        %v1377 = vsel %vm1310, %v1356, 0.0
        %1378 = vadd.xlane.f32.xlu0 %v1377
        %v1379 = vpop.xlane.xlu0 %1378
        %v1380 = vsel %vm1310, %v1358, 0.0
        %1381 = vadd.xlane.f32.xlu0 %v1380
        %v1382 = vpop.xlane.xlu0 %1381
        %v1383 = vrcp.pop %v1361
        %v1384 = vrcp.pop %v1364
        %v1385 = vrcp.pop %v1367
        %v1386 = vrcp.pop %v1370
        %v1387 = vrcp.pop %v1373
        %v1388 = vrcp.pop %v1376
        %v1389 = vrcp.pop %v1379
        %v1390 = vrcp.pop %v1382
        %v1391 = vmul.f32 %v1344, %v1383
        %v1392 = vmul.f32 %v1346, %v1384
        %v1393 = vmul.f32 %v1348, %v1385
        %v1394 = vmul.f32 %v1350, %v1386
        %v1395 = vmul.f32 %v1352, %v1387
        %v1396 = vmul.f32 %v1354, %v1388
        %v1397 = vmul.f32 %v1356, %v1389
        %v1398 = vmul.f32 %v1358, %v1390
        %v1399 = vrot.slane %v1311, 4
        %v1400 = vmax.f32 %v1311, %v1399
        %v1401 = vrot.slane %v1400, 2
        %v1402 = vmax.f32 %v1400, %v1401
        %v1403 = vrot.slane %v1402, 1
        %v1404 = vmax.f32 %v1402, %v1403
        %v1405 = vrot.slane %v1314, 4
        %v1406 = vmax.f32 %v1314, %v1405
        %v1407 = vrot.slane %v1406, 2
        %v1408 = vmax.f32 %v1406, %v1407
        %v1409 = vrot.slane %v1408, 1
        %v1410 = vmax.f32 %v1408, %v1409
        %v1411 = vrot.slane %v1317, 4
        %v1412 = vmax.f32 %v1317, %v1411
        %v1413 = vrot.slane %v1412, 2
        %v1414 = vmax.f32 %v1412, %v1413
        %v1415 = vrot.slane %v1414, 1
        %v1416 = vmax.f32 %v1414, %v1415
        %v1417 = vrot.slane %v1320, 4
        %v1418 = vmax.f32 %v1320, %v1417
        %v1419 = vrot.slane %v1418, 2
        %v1420 = vmax.f32 %v1418, %v1419
        %v1421 = vrot.slane %v1420, 1
        %v1422 = vmax.f32 %v1420, %v1421
        %v1423 = vrot.slane %v1323, 4
        %v1424 = vmax.f32 %v1323, %v1423
        %v1425 = vrot.slane %v1424, 2
        %v1426 = vmax.f32 %v1424, %v1425
        %v1427 = vrot.slane %v1426, 1
        %v1428 = vmax.f32 %v1426, %v1427
        %v1429 = vrot.slane %v1326, 4
        %v1430 = vmax.f32 %v1326, %v1429
        %v1431 = vrot.slane %v1430, 2
        %v1432 = vmax.f32 %v1430, %v1431
        %v1433 = vrot.slane %v1432, 1
        %v1434 = vmax.f32 %v1432, %v1433
        %v1435 = vrot.slane %v1329, 4
        %v1436 = vmax.f32 %v1329, %v1435
        %v1437 = vrot.slane %v1436, 2
        %v1438 = vmax.f32 %v1436, %v1437
        %v1439 = vrot.slane %v1438, 1
        %v1440 = vmax.f32 %v1438, %v1439
        %v1441 = vrot.slane %v1332, 4
        %v1442 = vmax.f32 %v1332, %v1441
        %v1443 = vrot.slane %v1442, 2
        %v1444 = vmax.f32 %v1442, %v1443
        %v1445 = vrot.slane %v1444, 1
        %v1446 = vmax.f32 %v1444, %v1445
        %v1447 = vsub.f32 %v1174, %v1404
        %v1448 = vsub.f32 %v1193, %v1410
        %v1449 = vsub.f32 %v1212, %v1416
        %v1450 = vsub.f32 %v1231, %v1422
        %v1451 = vsub.f32 %v1250, %v1428
        %v1452 = vsub.f32 %v1269, %v1434
        %v1453 = vsub.f32 %v1288, %v1440
        %v1454 = vsub.f32 %v1307, %v1446
        %v1455 = vmul.f32 %v1447, 1.442695
        %v1456 = vpow.pop %v1455
        %v1457 = vmul.f32 %v1448, 1.442695
        %v1458 = vpow.pop %v1457
        %v1459 = vmul.f32 %v1449, 1.442695
        %v1460 = vpow.pop %v1459
        %v1461 = vmul.f32 %v1450, 1.442695
        %v1462 = vpow.pop %v1461
        %v1463 = vmul.f32 %v1451, 1.442695
        %v1464 = vpow.pop %v1463
        %v1465 = vmul.f32 %v1452, 1.442695
        %v1466 = vpow.pop %v1465
        %v1467 = vmul.f32 %v1453, 1.442695
        %v1468 = vpow.pop %v1467
        %v1469 = vmul.f32 %v1454, 1.442695
        %v1470 = vpow.pop %v1469
        %v1471 = vsel %vm1310, %v1456, 0.0
        %v1472 = vrot.slane %v1471, 4
        %v1473 = vadd.f32 %v1471, %v1472
        %v1474 = vrot.slane %v1473, 2
        %v1475 = vadd.f32 %v1473, %v1474
        %v1476 = vrot.slane %v1475, 1
        %v1477 = vadd.f32 %v1475, %v1476
        %v1478 = vsel %vm1310, %v1458, 0.0
        %v1479 = vrot.slane %v1478, 4
        %v1480 = vadd.f32 %v1478, %v1479
        %v1481 = vrot.slane %v1480, 2
        %v1482 = vadd.f32 %v1480, %v1481
        %v1483 = vrot.slane %v1482, 1
        %v1484 = vadd.f32 %v1482, %v1483
        %v1485 = vsel %vm1310, %v1460, 0.0
        %v1486 = vrot.slane %v1485, 4
        %v1487 = vadd.f32 %v1485, %v1486
        %v1488 = vrot.slane %v1487, 2
        %v1489 = vadd.f32 %v1487, %v1488
        %v1490 = vrot.slane %v1489, 1
        %v1491 = vadd.f32 %v1489, %v1490
        %v1492 = vsel %vm1310, %v1462, 0.0
        %v1493 = vrot.slane %v1492, 4
        %v1494 = vadd.f32 %v1492, %v1493
        %v1495 = vrot.slane %v1494, 2
        %v1496 = vadd.f32 %v1494, %v1495
        %v1497 = vrot.slane %v1496, 1
        %v1498 = vadd.f32 %v1496, %v1497
        %v1499 = vsel %vm1310, %v1464, 0.0
        %v1500 = vrot.slane %v1499, 4
        %v1501 = vadd.f32 %v1499, %v1500
        %v1502 = vrot.slane %v1501, 2
        %v1503 = vadd.f32 %v1501, %v1502
        %v1504 = vrot.slane %v1503, 1
        %v1505 = vadd.f32 %v1503, %v1504
        %v1506 = vsel %vm1310, %v1466, 0.0
        %v1507 = vrot.slane %v1506, 4
        %v1508 = vadd.f32 %v1506, %v1507
        %v1509 = vrot.slane %v1508, 2
        %v1510 = vadd.f32 %v1508, %v1509
        %v1511 = vrot.slane %v1510, 1
        %v1512 = vadd.f32 %v1510, %v1511
        %v1513 = vsel %vm1310, %v1468, 0.0
        %v1514 = vrot.slane %v1513, 4
        %v1515 = vadd.f32 %v1513, %v1514
        %v1516 = vrot.slane %v1515, 2
        %v1517 = vadd.f32 %v1515, %v1516
        %v1518 = vrot.slane %v1517, 1
        %v1519 = vadd.f32 %v1517, %v1518
        %v1520 = vsel %vm1310, %v1470, 0.0
        %v1521 = vrot.slane %v1520, 4
        %v1522 = vadd.f32 %v1520, %v1521
        %v1523 = vrot.slane %v1522, 2
        %v1524 = vadd.f32 %v1522, %v1523
        %v1525 = vrot.slane %v1524, 1
        %v1526 = vadd.f32 %v1524, %v1525
        %v1527 = vrcp.pop %v1477
        %v1528 = vrcp.pop %v1484
        %v1529 = vrcp.pop %v1491
        %v1530 = vrcp.pop %v1498
        %v1531 = vrcp.pop %v1505
        %v1532 = vrcp.pop %v1512
        %v1533 = vrcp.pop %v1519
        %v1534 = vrcp.pop %v1526
        %v1535 = vmul.f32 %v1456, %v1527
        %v1536 = vmul.f32 %v1458, %v1528
        %v1537 = vmul.f32 %v1460, %v1529
        %v1538 = vmul.f32 %v1462, %v1530
        %v1539 = vmul.f32 %v1464, %v1531
        %v1540 = vmul.f32 %v1466, %v1532
        %v1541 = vmul.f32 %v1468, %v1533
        %v1542 = vmul.f32 %v1470, %v1534
        %v1543 = vpack.c.bf16 %v1391, %v1391
        %v1544 = vpack.c.bf16 %v1392, %v1392
        %v1545 = vpack.c.bf16 %v1393, %v1393
        %v1546 = vpack.c.bf16 %v1394, %v1394
        %v1547 = vpack.c.bf16 %v1395, %v1395
        %v1548 = vpack.c.bf16 %v1396, %v1396
        %v1549 = vpack.c.bf16 %v1397, %v1397
        %v1550 = vpack.c.bf16 %v1398, %v1398
        %v1552 = vsel %vm1310, %v1543, 0
        %vm1554 = vcmask 1043456
        %v1556 = vsel %vm1554, %v797, 0
        %1558 = vmatpush.bf16.msra.mxu0 0
        %1559 = vmatpush.bf16.msra.mxu0 0
        %1560 = vmatpush.bf16.msra.mxu0 0
        %1561 = vmatpush.bf16.msra.mxu0 0
        %1562 = vmatpush.bf16.msra.mxu0 0
        %1563 = vmatpush.bf16.msra.mxu0 0
        %1564 = vmatpush.bf16.msra.mxu0 0
        %1565 = vmatpush.bf16.msra.mxu0 %v1556
        %1566 = vmatmul.bf16.gmra.mxu0 %v1552
        %v1567 = vpop.f32.mrf.mxu0
        %v1568 = vadd.f32 0.0, %v1567
        %v1569 = vpop.f32.mrf.mxu0
        %1570 = vdwg.mxu0
        %v1572 = vsel %vm1310, %v1544, 0
        %v1575 = vsel %vm1554, %v798, 0
        %1577 = vmatpush.bf16.msra.mxu0 0
        %1578 = vmatpush.bf16.msra.mxu0 0
        %1579 = vmatpush.bf16.msra.mxu0 0
        %1580 = vmatpush.bf16.msra.mxu0 0
        %1581 = vmatpush.bf16.msra.mxu0 0
        %1582 = vmatpush.bf16.msra.mxu0 0
        %1583 = vmatpush.bf16.msra.mxu0 0
        %1584 = vmatpush.bf16.msra.mxu0 %v1575
        %1585 = vmatmul.bf16.gmra.mxu0 %v1572
        %v1586 = vpop.f32.mrf.mxu0
        %v1587 = vadd.f32 0.0, %v1586
        %v1588 = vpop.f32.mrf.mxu0
        %1589 = vdwg.mxu0
        %v1591 = vsel %vm1310, %v1545, 0
        %v1594 = vsel %vm1554, %v799, 0
        %1596 = vmatpush.bf16.msra.mxu0 0
        %1597 = vmatpush.bf16.msra.mxu0 0
        %1598 = vmatpush.bf16.msra.mxu0 0
        %1599 = vmatpush.bf16.msra.mxu0 0
        %1600 = vmatpush.bf16.msra.mxu0 0
        %1601 = vmatpush.bf16.msra.mxu0 0
        %1602 = vmatpush.bf16.msra.mxu0 0
        %1603 = vmatpush.bf16.msra.mxu0 %v1594
        %1604 = vmatmul.bf16.gmra.mxu0 %v1591
        %v1605 = vpop.f32.mrf.mxu0
        %v1606 = vadd.f32 0.0, %v1605
        %v1607 = vpop.f32.mrf.mxu0
        %1608 = vdwg.mxu0
        %v1610 = vsel %vm1310, %v1546, 0
        %v1613 = vsel %vm1554, %v800, 0
        %1615 = vmatpush.bf16.msra.mxu0 0
        %1616 = vmatpush.bf16.msra.mxu0 0
        %1617 = vmatpush.bf16.msra.mxu0 0
        %1618 = vmatpush.bf16.msra.mxu0 0
        %1619 = vmatpush.bf16.msra.mxu0 0
        %1620 = vmatpush.bf16.msra.mxu0 0
        %1621 = vmatpush.bf16.msra.mxu0 0
        %1622 = vmatpush.bf16.msra.mxu0 %v1613
        %1623 = vmatmul.bf16.gmra.mxu0 %v1610
        %v1624 = vpop.f32.mrf.mxu0
        %v1625 = vadd.f32 0.0, %v1624
        %v1626 = vpop.f32.mrf.mxu0
        %1627 = vdwg.mxu0
        %v1629 = vsel %vm1310, %v1547, 0
        %v1632 = vsel %vm1554, %v801, 0
        %1634 = vmatpush.bf16.msra.mxu0 0
        %1635 = vmatpush.bf16.msra.mxu0 0
        %1636 = vmatpush.bf16.msra.mxu0 0
        %1637 = vmatpush.bf16.msra.mxu0 0
        %1638 = vmatpush.bf16.msra.mxu0 0
        %1639 = vmatpush.bf16.msra.mxu0 0
        %1640 = vmatpush.bf16.msra.mxu0 0
        %1641 = vmatpush.bf16.msra.mxu0 %v1632
        %1642 = vmatmul.bf16.gmra.mxu0 %v1629
        %v1643 = vpop.f32.mrf.mxu0
        %v1644 = vadd.f32 0.0, %v1643
        %v1645 = vpop.f32.mrf.mxu0
        %1646 = vdwg.mxu0
        %v1648 = vsel %vm1310, %v1548, 0
        %v1651 = vsel %vm1554, %v802, 0
        %1653 = vmatpush.bf16.msra.mxu0 0
        %1654 = vmatpush.bf16.msra.mxu0 0
        %1655 = vmatpush.bf16.msra.mxu0 0
        %1656 = vmatpush.bf16.msra.mxu0 0
        %1657 = vmatpush.bf16.msra.mxu0 0
        %1658 = vmatpush.bf16.msra.mxu0 0
        %1659 = vmatpush.bf16.msra.mxu0 0
        %1660 = vmatpush.bf16.msra.mxu0 %v1651
        %1661 = vmatmul.bf16.gmra.mxu0 %v1648
        %v1662 = vpop.f32.mrf.mxu0
        %v1663 = vadd.f32 0.0, %v1662
        %v1664 = vpop.f32.mrf.mxu0
        %1665 = vdwg.mxu0
        %v1667 = vsel %vm1310, %v1549, 0
        %v1670 = vsel %vm1554, %v803, 0
        %1672 = vmatpush.bf16.msra.mxu0 0
        %1673 = vmatpush.bf16.msra.mxu0 0
        %1674 = vmatpush.bf16.msra.mxu0 0
        %1675 = vmatpush.bf16.msra.mxu0 0
        %1676 = vmatpush.bf16.msra.mxu0 0
        %1677 = vmatpush.bf16.msra.mxu0 0
        %1678 = vmatpush.bf16.msra.mxu0 0
        %1679 = vmatpush.bf16.msra.mxu0 %v1670
        %1680 = vmatmul.bf16.gmra.mxu0 %v1667
        %v1681 = vpop.f32.mrf.mxu0
        %v1682 = vadd.f32 0.0, %v1681
        %v1683 = vpop.f32.mrf.mxu0
        %1684 = vdwg.mxu0
        %v1686 = vsel %vm1310, %v1550, 0
        %v1689 = vsel %vm1554, %v804, 0
        %1691 = vmatpush.bf16.msra.mxu0 0
        %1692 = vmatpush.bf16.msra.mxu0 0
        %1693 = vmatpush.bf16.msra.mxu0 0
        %1694 = vmatpush.bf16.msra.mxu0 0
        %1695 = vmatpush.bf16.msra.mxu0 0
        %1696 = vmatpush.bf16.msra.mxu0 0
        %1697 = vmatpush.bf16.msra.mxu0 0
        %1698 = vmatpush.bf16.msra.mxu0 %v1689
        %1699 = vmatmul.bf16.gmra.mxu0 %v1686
        %v1700 = vpop.f32.mrf.mxu0
        %v1701 = vadd.f32 0.0, %v1700
        %v1702 = vpop.f32.mrf.mxu0
        %1703 = vdwg.mxu0
        %v1704 = vpack.c.bf16 %v1535, %v1535
        %v1705 = vpack.c.bf16 %v1536, %v1536
        %v1706 = vpack.c.bf16 %v1537, %v1537
        %v1707 = vpack.c.bf16 %v1538, %v1538
        %v1708 = vpack.c.bf16 %v1539, %v1539
        %v1709 = vpack.c.bf16 %v1540, %v1540
        %v1710 = vpack.c.bf16 %v1541, %v1541
        %v1711 = vpack.c.bf16 %v1542, %v1542
        %1712 = vxpose.xlu0.c.b16.start [1/8] %v1704, 128
        %1713 = vxpose.xlu0.c.b16.cont [2/8] 0, 128
        %1714 = vxpose.xlu0.c.b16.cont [3/8] 0, 128
        %1715 = vxpose.xlu0.c.b16.cont [4/8] 0, 128
        %1716 = vxpose.xlu0.c.b16.cont [5/8] 0, 128
        %1717 = vxpose.xlu0.c.b16.cont [6/8] 0, 128
        %1718 = vxpose.xlu0.c.b16.cont [7/8] 0, 128
        %1719 = vxpose.xlu0.c.b16.end [8/8] 0, 128
        %v1720 = vpop.trf.xlu0
        %v1721 = vpop.trf.xlu0
        %v1722 = vpop.trf.xlu0
        %v1723 = vpop.trf.xlu0
        %v1724 = vpop.trf.xlu0
        %v1725 = vpop.trf.xlu0
        %v1726 = vpop.trf.xlu0
        %v1727 = vpop.trf.xlu0
        %v1729 = vsel %vm1310, %v1720, 0
        %v1732 = vsel %vm1554, %v789, 0
        %1734 = vmatpush.bf16.msra.mxu0 0
        %1735 = vmatpush.bf16.msra.mxu0 0
        %1736 = vmatpush.bf16.msra.mxu0 0
        %1737 = vmatpush.bf16.msra.mxu0 0
        %1738 = vmatpush.bf16.msra.mxu0 0
        %1739 = vmatpush.bf16.msra.mxu0 0
        %1740 = vmatpush.bf16.msra.mxu0 0
        %1741 = vmatpush.bf16.msra.mxu0 %v1732
        %1742 = vmatmul.bf16.gmra.mxu0 %v1729
        %v1743 = vpop.f32.mrf.mxu0
        %v1744 = vadd.f32 0.0, %v1743
        %v1745 = vpop.f32.mrf.mxu0
        %1746 = vdwg.mxu0
        %1747 = vxpose.xlu0.c.b16.start [1/8] %v1705, 128
        %1748 = vxpose.xlu0.c.b16.cont [2/8] 0, 128
        %1749 = vxpose.xlu0.c.b16.cont [3/8] 0, 128
        %1750 = vxpose.xlu0.c.b16.cont [4/8] 0, 128
        %1751 = vxpose.xlu0.c.b16.cont [5/8] 0, 128
        %1752 = vxpose.xlu0.c.b16.cont [6/8] 0, 128
        %1753 = vxpose.xlu0.c.b16.cont [7/8] 0, 128
        %1754 = vxpose.xlu0.c.b16.end [8/8] 0, 128
        %v1755 = vpop.trf.xlu0
        %v1756 = vpop.trf.xlu0
        %v1757 = vpop.trf.xlu0
        %v1758 = vpop.trf.xlu0
        %v1759 = vpop.trf.xlu0
        %v1760 = vpop.trf.xlu0
        %v1761 = vpop.trf.xlu0
        %v1762 = vpop.trf.xlu0
        %v1764 = vsel %vm1310, %v1755, 0
        %v1767 = vsel %vm1554, %v790, 0
        %1769 = vmatpush.bf16.msra.mxu0 0
        %1770 = vmatpush.bf16.msra.mxu0 0
        %1771 = vmatpush.bf16.msra.mxu0 0
        %1772 = vmatpush.bf16.msra.mxu0 0
        %1773 = vmatpush.bf16.msra.mxu0 0
        %1774 = vmatpush.bf16.msra.mxu0 0
        %1775 = vmatpush.bf16.msra.mxu0 0
        %1776 = vmatpush.bf16.msra.mxu0 %v1767
        %1777 = vmatmul.bf16.gmra.mxu0 %v1764
        %v1778 = vpop.f32.mrf.mxu0
        %v1779 = vadd.f32 0.0, %v1778
        %v1780 = vpop.f32.mrf.mxu0
        %1781 = vdwg.mxu0
        %1782 = vxpose.xlu0.c.b16.start [1/8] %v1706, 128
        %1783 = vxpose.xlu0.c.b16.cont [2/8] 0, 128
        %1784 = vxpose.xlu0.c.b16.cont [3/8] 0, 128
        %1785 = vxpose.xlu0.c.b16.cont [4/8] 0, 128
        %1786 = vxpose.xlu0.c.b16.cont [5/8] 0, 128
        %1787 = vxpose.xlu0.c.b16.cont [6/8] 0, 128
        %1788 = vxpose.xlu0.c.b16.cont [7/8] 0, 128
        %1789 = vxpose.xlu0.c.b16.end [8/8] 0, 128
        %v1790 = vpop.trf.xlu0
        %v1791 = vpop.trf.xlu0
        %v1792 = vpop.trf.xlu0
        %v1793 = vpop.trf.xlu0
        %v1794 = vpop.trf.xlu0
        %v1795 = vpop.trf.xlu0
        %v1796 = vpop.trf.xlu0
        %v1797 = vpop.trf.xlu0
        %v1799 = vsel %vm1310, %v1790, 0
        %v1802 = vsel %vm1554, %v791, 0
        %1804 = vmatpush.bf16.msra.mxu0 0
        %1805 = vmatpush.bf16.msra.mxu0 0
        %1806 = vmatpush.bf16.msra.mxu0 0
        %1807 = vmatpush.bf16.msra.mxu0 0
        %1808 = vmatpush.bf16.msra.mxu0 0
        %1809 = vmatpush.bf16.msra.mxu0 0
        %1810 = vmatpush.bf16.msra.mxu0 0
        %1811 = vmatpush.bf16.msra.mxu0 %v1802
        %1812 = vmatmul.bf16.gmra.mxu0 %v1799
        %v1813 = vpop.f32.mrf.mxu0
        %v1814 = vadd.f32 0.0, %v1813
        %v1815 = vpop.f32.mrf.mxu0
        %1816 = vdwg.mxu0
        %1817 = vxpose.xlu0.c.b16.start [1/8] %v1707, 128
        %1818 = vxpose.xlu0.c.b16.cont [2/8] 0, 128
        %1819 = vxpose.xlu0.c.b16.cont [3/8] 0, 128
        %1820 = vxpose.xlu0.c.b16.cont [4/8] 0, 128
        %1821 = vxpose.xlu0.c.b16.cont [5/8] 0, 128
        %1822 = vxpose.xlu0.c.b16.cont [6/8] 0, 128
        %1823 = vxpose.xlu0.c.b16.cont [7/8] 0, 128
        %1824 = vxpose.xlu0.c.b16.end [8/8] 0, 128
        %v1825 = vpop.trf.xlu0
        %v1826 = vpop.trf.xlu0
        %v1827 = vpop.trf.xlu0
        %v1828 = vpop.trf.xlu0
        %v1829 = vpop.trf.xlu0
        %v1830 = vpop.trf.xlu0
        %v1831 = vpop.trf.xlu0
        %v1832 = vpop.trf.xlu0
        %v1834 = vsel %vm1310, %v1825, 0
        %v1837 = vsel %vm1554, %v792, 0
        %1839 = vmatpush.bf16.msra.mxu0 0
        %1840 = vmatpush.bf16.msra.mxu0 0
        %1841 = vmatpush.bf16.msra.mxu0 0
        %1842 = vmatpush.bf16.msra.mxu0 0
        %1843 = vmatpush.bf16.msra.mxu0 0
        %1844 = vmatpush.bf16.msra.mxu0 0
        %1845 = vmatpush.bf16.msra.mxu0 0
        %1846 = vmatpush.bf16.msra.mxu0 %v1837
        %1847 = vmatmul.bf16.gmra.mxu0 %v1834
        %v1848 = vpop.f32.mrf.mxu0
        %v1849 = vadd.f32 0.0, %v1848
        %v1850 = vpop.f32.mrf.mxu0
        %1851 = vdwg.mxu0
        %1852 = vxpose.xlu0.c.b16.start [1/8] %v1708, 128
        %1853 = vxpose.xlu0.c.b16.cont [2/8] 0, 128
        %1854 = vxpose.xlu0.c.b16.cont [3/8] 0, 128
        %1855 = vxpose.xlu0.c.b16.cont [4/8] 0, 128
        %1856 = vxpose.xlu0.c.b16.cont [5/8] 0, 128
        %1857 = vxpose.xlu0.c.b16.cont [6/8] 0, 128
        %1858 = vxpose.xlu0.c.b16.cont [7/8] 0, 128
        %1859 = vxpose.xlu0.c.b16.end [8/8] 0, 128
        %v1860 = vpop.trf.xlu0
        %v1861 = vpop.trf.xlu0
        %v1862 = vpop.trf.xlu0
        %v1863 = vpop.trf.xlu0
        %v1864 = vpop.trf.xlu0
        %v1865 = vpop.trf.xlu0
        %v1866 = vpop.trf.xlu0
        %v1867 = vpop.trf.xlu0
        %v1869 = vsel %vm1310, %v1860, 0
        %v1872 = vsel %vm1554, %v793, 0
        %1874 = vmatpush.bf16.msra.mxu0 0
        %1875 = vmatpush.bf16.msra.mxu0 0
        %1876 = vmatpush.bf16.msra.mxu0 0
        %1877 = vmatpush.bf16.msra.mxu0 0
        %1878 = vmatpush.bf16.msra.mxu0 0
        %1879 = vmatpush.bf16.msra.mxu0 0
        %1880 = vmatpush.bf16.msra.mxu0 0
        %1881 = vmatpush.bf16.msra.mxu0 %v1872
        %1882 = vmatmul.bf16.gmra.mxu0 %v1869
        %v1883 = vpop.f32.mrf.mxu0
        %v1884 = vadd.f32 0.0, %v1883
        %v1885 = vpop.f32.mrf.mxu0
        %1886 = vdwg.mxu0
        %1887 = vxpose.xlu0.c.b16.start [1/8] %v1709, 128
        %1888 = vxpose.xlu0.c.b16.cont [2/8] 0, 128
        %1889 = vxpose.xlu0.c.b16.cont [3/8] 0, 128
        %1890 = vxpose.xlu0.c.b16.cont [4/8] 0, 128
        %1891 = vxpose.xlu0.c.b16.cont [5/8] 0, 128
        %1892 = vxpose.xlu0.c.b16.cont [6/8] 0, 128
        %1893 = vxpose.xlu0.c.b16.cont [7/8] 0, 128
        %1894 = vxpose.xlu0.c.b16.end [8/8] 0, 128
        %v1895 = vpop.trf.xlu0
        %v1896 = vpop.trf.xlu0
        %v1897 = vpop.trf.xlu0
        %v1898 = vpop.trf.xlu0
        %v1899 = vpop.trf.xlu0
        %v1900 = vpop.trf.xlu0
        %v1901 = vpop.trf.xlu0
        %v1902 = vpop.trf.xlu0
        %v1904 = vsel %vm1310, %v1895, 0
        %v1907 = vsel %vm1554, %v794, 0
        %1909 = vmatpush.bf16.msra.mxu0 0
        %1910 = vmatpush.bf16.msra.mxu0 0
        %1911 = vmatpush.bf16.msra.mxu0 0
        %1912 = vmatpush.bf16.msra.mxu0 0
        %1913 = vmatpush.bf16.msra.mxu0 0
        %1914 = vmatpush.bf16.msra.mxu0 0
        %1915 = vmatpush.bf16.msra.mxu0 0
        %1916 = vmatpush.bf16.msra.mxu0 %v1907
        %1917 = vmatmul.bf16.gmra.mxu0 %v1904
        %v1918 = vpop.f32.mrf.mxu0
        %v1919 = vadd.f32 0.0, %v1918
        %v1920 = vpop.f32.mrf.mxu0
        %1921 = vdwg.mxu0
        %1922 = vxpose.xlu0.c.b16.start [1/8] %v1710, 128
        %1923 = vxpose.xlu0.c.b16.cont [2/8] 0, 128
        %1924 = vxpose.xlu0.c.b16.cont [3/8] 0, 128
        %1925 = vxpose.xlu0.c.b16.cont [4/8] 0, 128
        %1926 = vxpose.xlu0.c.b16.cont [5/8] 0, 128
        %1927 = vxpose.xlu0.c.b16.cont [6/8] 0, 128
        %1928 = vxpose.xlu0.c.b16.cont [7/8] 0, 128
        %1929 = vxpose.xlu0.c.b16.end [8/8] 0, 128
        %v1930 = vpop.trf.xlu0
        %v1931 = vpop.trf.xlu0
        %v1932 = vpop.trf.xlu0
        %v1933 = vpop.trf.xlu0
        %v1934 = vpop.trf.xlu0
        %v1935 = vpop.trf.xlu0
        %v1936 = vpop.trf.xlu0
        %v1937 = vpop.trf.xlu0
        %v1939 = vsel %vm1310, %v1930, 0
        %v1942 = vsel %vm1554, %v795, 0
        %1944 = vmatpush.bf16.msra.mxu0 0
        %1945 = vmatpush.bf16.msra.mxu0 0
        %1946 = vmatpush.bf16.msra.mxu0 0
        %1947 = vmatpush.bf16.msra.mxu0 0
        %1948 = vmatpush.bf16.msra.mxu0 0
        %1949 = vmatpush.bf16.msra.mxu0 0
        %1950 = vmatpush.bf16.msra.mxu0 0
        %1951 = vmatpush.bf16.msra.mxu0 %v1942
        %1952 = vmatmul.bf16.gmra.mxu0 %v1939
        %v1953 = vpop.f32.mrf.mxu0
        %v1954 = vadd.f32 0.0, %v1953
        %v1955 = vpop.f32.mrf.mxu0
        %1956 = vdwg.mxu0
        %1957 = vxpose.xlu0.c.b16.start [1/8] %v1711, 128
        %1958 = vxpose.xlu0.c.b16.cont [2/8] 0, 128
        %1959 = vxpose.xlu0.c.b16.cont [3/8] 0, 128
        %1960 = vxpose.xlu0.c.b16.cont [4/8] 0, 128
        %1961 = vxpose.xlu0.c.b16.cont [5/8] 0, 128
        %1962 = vxpose.xlu0.c.b16.cont [6/8] 0, 128
        %1963 = vxpose.xlu0.c.b16.cont [7/8] 0, 128
        %1964 = vxpose.xlu0.c.b16.end [8/8] 0, 128
        %v1965 = vpop.trf.xlu0
        %v1966 = vpop.trf.xlu0
        %v1967 = vpop.trf.xlu0
        %v1968 = vpop.trf.xlu0
        %v1969 = vpop.trf.xlu0
        %v1970 = vpop.trf.xlu0
        %v1971 = vpop.trf.xlu0
        %v1972 = vpop.trf.xlu0
        %v1974 = vsel %vm1310, %v1965, 0
        %v1977 = vsel %vm1554, %v796, 0
        %1979 = vmatpush.bf16.msra.mxu0 0
        %1980 = vmatpush.bf16.msra.mxu0 0
        %1981 = vmatpush.bf16.msra.mxu0 0
        %1982 = vmatpush.bf16.msra.mxu0 0
        %1983 = vmatpush.bf16.msra.mxu0 0
        %1984 = vmatpush.bf16.msra.mxu0 0
        %1985 = vmatpush.bf16.msra.mxu0 0
        %1986 = vmatpush.bf16.msra.mxu0 %v1977
        %1987 = vmatmul.bf16.gmra.mxu0 %v1974
        %v1988 = vpop.f32.mrf.mxu0
        %v1989 = vadd.f32 0.0, %v1988
        %v1990 = vpop.f32.mrf.mxu0
        %1991 = vdwg.mxu0
        %v1992 = vpack.c.bf16 %v1587, %v1568
        %v1993 = vpack.c.bf16 %v1625, %v1606
        %v1994 = vpack.c.bf16 %v1663, %v1644
        %v1995 = vpack.c.bf16 %v1701, %v1682
        %v1996 = vpack.c.bf16 %v1779, %v1744
        %v1997 = vpack.c.bf16 %v1849, %v1814
        %v1998 = vpack.c.bf16 %v1919, %v1884
        %v1999 = vpack.c.bf16 %v1989, %v1954
        %v2004 = vunpack.c.l.b16 %v823
        %v2005 = vunpack.c.l.b16 %v824
        %v2006 = vunpack.c.l.b16 %v825
        %v2007 = vunpack.c.l.b16 %v826
        %v2008 = vpack.c.b16 %v2005, %v2004
        %v2009 = vpack.c.b16 %v2007, %v2006
        %v2013 = vsel %vm927, %v1992, 0
        %v2016 = vsel %vm927, %v1993, 0
        %v2019 = vsel %vm927, %v1994, 0
        %v2022 = vsel %vm927, %v1995, 0
        %v2025 = vsel %vm927, %v1996, 0
        %v2028 = vsel %vm927, %v1997, 0
        %v2031 = vsel %vm927, %v1998, 0
        %v2034 = vsel %vm927, %v1999, 0
        %2036 = vmatpush.bf16.msra.mxu0 0
        %2037 = vmatpush.bf16.msra.mxu0 0
        %2038 = vmatpush.bf16.msra.mxu0 0
        %2039 = vmatpush.bf16.msra.mxu0 0
        %2040 = vmatpush.bf16.msra.mxu0 0
        %2041 = vmatpush.bf16.msra.mxu0 0
        %2042 = vmatpush.bf16.msra.mxu0 %v2009
        %2043 = vmatpush.bf16.msra.mxu0 %v2008
        %2044 = vmatmul.bf16.gmra.mxu0 %v2013
        %v2045 = vpop.f32.mrf.mxu0
        %v2046 = vadd.f32 0.0, %v2045
        %v2047 = vpop.f32.mrf.mxu0
        %v2048 = vadd.f32 0.0, %v2047
        %2049 = vmatmul.bf16.gmra.mxu0 %v2016
        %v2050 = vpop.f32.mrf.mxu0
        %v2051 = vadd.f32 0.0, %v2050
        %v2052 = vpop.f32.mrf.mxu0
        %v2053 = vadd.f32 0.0, %v2052
        %2054 = vmatmul.bf16.gmra.mxu0 %v2019
        %v2055 = vpop.f32.mrf.mxu0
        %v2056 = vadd.f32 0.0, %v2055
        %v2057 = vpop.f32.mrf.mxu0
        %v2058 = vadd.f32 0.0, %v2057
        %2059 = vmatmul.bf16.gmra.mxu0 %v2022
        %v2060 = vpop.f32.mrf.mxu0
        %v2061 = vadd.f32 0.0, %v2060
        %v2062 = vpop.f32.mrf.mxu0
        %v2063 = vadd.f32 0.0, %v2062
        %2064 = vmatmul.bf16.gmra.mxu0 %v2025
        %v2065 = vpop.f32.mrf.mxu0
        %v2066 = vadd.f32 0.0, %v2065
        %v2067 = vpop.f32.mrf.mxu0
        %v2068 = vadd.f32 0.0, %v2067
        %2069 = vmatmul.bf16.gmra.mxu0 %v2028
        %v2070 = vpop.f32.mrf.mxu0
        %v2071 = vadd.f32 0.0, %v2070
        %v2072 = vpop.f32.mrf.mxu0
        %v2073 = vadd.f32 0.0, %v2072
        %2074 = vmatmul.bf16.gmra.mxu0 %v2031
        %v2075 = vpop.f32.mrf.mxu0
        %v2076 = vadd.f32 0.0, %v2075
        %v2077 = vpop.f32.mrf.mxu0
        %v2078 = vadd.f32 0.0, %v2077
        %2079 = vmatmul.bf16.gmra.mxu0 %v2034
        %v2080 = vpop.f32.mrf.mxu0
        %v2081 = vadd.f32 0.0, %v2080
        %v2082 = vpop.f32.mrf.mxu0
        %v2083 = vadd.f32 0.0, %v2082
        %2084 = vdwg.mxu0
        %v2089 = vunpack.c.l.b16 %v819
        %v2090 = vunpack.c.l.b16 %v820
        %v2091 = vunpack.c.l.b16 %v821
        %v2092 = vunpack.c.l.b16 %v822
        %v2093 = vpack.c.b16 %v2090, %v2089
        %v2094 = vpack.c.b16 %v2092, %v2091
        %2097 = vmatpush.bf16.msra.mxu0 0
        %2098 = vmatpush.bf16.msra.mxu0 0
        %2099 = vmatpush.bf16.msra.mxu0 0
        %2100 = vmatpush.bf16.msra.mxu0 0
        %2101 = vmatpush.bf16.msra.mxu0 0
        %2102 = vmatpush.bf16.msra.mxu0 0
        %2103 = vmatpush.bf16.msra.mxu0 %v2094
        %2104 = vmatpush.bf16.msra.mxu0 %v2093
        %2105 = vmatmul.bf16.gmra.mxu0 %v929
        %v2106 = vpop.f32.mrf.mxu0
        %v2107 = vadd.f32 %v2046, %v2106
        %v2108 = vpop.f32.mrf.mxu0
        %v2109 = vadd.f32 %v2048, %v2108
        %2110 = vmatmul.bf16.gmra.mxu0 %v932
        %v2111 = vpop.f32.mrf.mxu0
        %v2112 = vadd.f32 %v2051, %v2111
        %v2113 = vpop.f32.mrf.mxu0
        %v2114 = vadd.f32 %v2053, %v2113
        %2115 = vmatmul.bf16.gmra.mxu0 %v935
        %v2116 = vpop.f32.mrf.mxu0
        %v2117 = vadd.f32 %v2056, %v2116
        %v2118 = vpop.f32.mrf.mxu0
        %v2119 = vadd.f32 %v2058, %v2118
        %2120 = vmatmul.bf16.gmra.mxu0 %v938
        %v2121 = vpop.f32.mrf.mxu0
        %v2122 = vadd.f32 %v2061, %v2121
        %v2123 = vpop.f32.mrf.mxu0
        %v2124 = vadd.f32 %v2063, %v2123
        %2125 = vmatmul.bf16.gmra.mxu0 %v941
        %v2126 = vpop.f32.mrf.mxu0
        %v2127 = vadd.f32 %v2066, %v2126
        %v2128 = vpop.f32.mrf.mxu0
        %v2129 = vadd.f32 %v2068, %v2128
        %2130 = vmatmul.bf16.gmra.mxu0 %v944
        %v2131 = vpop.f32.mrf.mxu0
        %v2132 = vadd.f32 %v2071, %v2131
        %v2133 = vpop.f32.mrf.mxu0
        %v2134 = vadd.f32 %v2073, %v2133
        %2135 = vmatmul.bf16.gmra.mxu0 %v947
        %v2136 = vpop.f32.mrf.mxu0
        %v2137 = vadd.f32 %v2076, %v2136
        %v2138 = vpop.f32.mrf.mxu0
        %v2139 = vadd.f32 %v2078, %v2138
        %2140 = vmatmul.bf16.gmra.mxu0 %v950
        %v2141 = vpop.f32.mrf.mxu0
        %v2142 = vadd.f32 %v2081, %v2141
        %v2143 = vpop.f32.mrf.mxu0
        %v2144 = vadd.f32 %v2083, %v2143
        %2145 = vdwg.mxu0
        %v2147 = vperm.slane %v827, 0
        %v2149 = vadd.f32 %v2107, %v2147
        %v2150 = vadd.f32 %v2109, %v2147
        %v2151 = vadd.f32 %v2112, %v2147
        %v2152 = vadd.f32 %v2114, %v2147
        %v2153 = vadd.f32 %v2117, %v2147
        %v2154 = vadd.f32 %v2119, %v2147
        %v2155 = vadd.f32 %v2122, %v2147
        %v2156 = vadd.f32 %v2124, %v2147
        %v2157 = vadd.f32 %v2127, %v2147
        %v2158 = vadd.f32 %v2129, %v2147
        %v2159 = vadd.f32 %v2132, %v2147
        %v2160 = vadd.f32 %v2134, %v2147
        %v2161 = vadd.f32 %v2137, %v2147
        %v2162 = vadd.f32 %v2139, %v2147
        %v2163 = vadd.f32 %v2142, %v2147
        %v2164 = vadd.f32 %v2144, %v2147
        %v2165 = vmax.f32 %v2149, 0.0
        %v2166 = vmax.f32 %v2150, 0.0
        %v2167 = vmax.f32 %v2151, 0.0
        %v2168 = vmax.f32 %v2152, 0.0
        %v2169 = vmax.f32 %v2153, 0.0
        %v2170 = vmax.f32 %v2154, 0.0
        %v2171 = vmax.f32 %v2155, 0.0
        %v2172 = vmax.f32 %v2156, 0.0
        %v2173 = vmax.f32 %v2157, 0.0
        %v2174 = vmax.f32 %v2158, 0.0
        %v2175 = vmax.f32 %v2159, 0.0
        %v2176 = vmax.f32 %v2160, 0.0
        %v2177 = vmax.f32 %v2161, 0.0
        %v2178 = vmax.f32 %v2162, 0.0
        %v2179 = vmax.f32 %v2163, 0.0
        %v2180 = vmax.f32 %v2164, 0.0
        %v2181 = vpack.c.bf16 %v2166, %v2165
        %v2182 = vpack.c.bf16 %v2168, %v2167
        %v2183 = vpack.c.bf16 %v2170, %v2169
        %v2184 = vpack.c.bf16 %v2172, %v2171
        %v2185 = vpack.c.bf16 %v2174, %v2173
        %v2186 = vpack.c.bf16 %v2176, %v2175
        %v2187 = vpack.c.bf16 %v2178, %v2177
        %v2188 = vpack.c.bf16 %v2180, %v2179
        %v2190 = vperm.slane %v836, 0
        %v2200 = vunpack.c.l.b16 %v828
        %v2201 = vunpack.c.l.b16 %v829
        %v2202 = vunpack.c.l.b16 %v830
        %v2203 = vunpack.c.l.b16 %v831
        %v2204 = vunpack.c.l.b16 %v832
        %v2205 = vunpack.c.l.b16 %v833
        %v2206 = vunpack.c.l.b16 %v834
        %v2207 = vunpack.c.l.b16 %v835
        %v2208 = vpack.c.b16 %v2201, %v2200
        %v2209 = vpack.c.b16 %v2203, %v2202
        %v2210 = vpack.c.b16 %v2205, %v2204
        %v2211 = vpack.c.b16 %v2207, %v2206
        %v2217 = vsel %vm1052, %v2181, 0
        %v2220 = vsel %vm1052, %v2182, 0
        %v2223 = vsel %vm1052, %v2183, 0
        %v2226 = vsel %vm1052, %v2184, 0
        %v2229 = vsel %vm1052, %v2185, 0
        %v2232 = vsel %vm1052, %v2186, 0
        %v2235 = vsel %vm1052, %v2187, 0
        %v2238 = vsel %vm1052, %v2188, 0
        %2240 = vmatpush.bf16.msra.mxu0 0
        %2241 = vmatpush.bf16.msra.mxu0 0
        %2242 = vmatpush.bf16.msra.mxu0 0
        %2243 = vmatpush.bf16.msra.mxu0 0
        %2244 = vmatpush.bf16.msra.mxu0 %v2211
        %2245 = vmatpush.bf16.msra.mxu0 %v2210
        %2246 = vmatpush.bf16.msra.mxu0 %v2209
        %2247 = vmatpush.bf16.msra.mxu0 %v2208
        %2248 = vmatmul.bf16.gmra.mxu0 %v2217
        %v2249 = vpop.f32.mrf.mxu0
        %v2250 = vadd.f32 %v2190, %v2249
        %v2251 = vpop.f32.mrf.mxu0
        %v2252 = vadd.f32 %v2190, %v2251
        %2253 = vmatmul.bf16.gmra.mxu0 %v2220
        %v2254 = vpop.f32.mrf.mxu0
        %v2255 = vadd.f32 %v2190, %v2254
        %v2256 = vpop.f32.mrf.mxu0
        %v2257 = vadd.f32 %v2190, %v2256
        %2258 = vmatmul.bf16.gmra.mxu0 %v2223
        %v2259 = vpop.f32.mrf.mxu0
        %v2260 = vadd.f32 %v2190, %v2259
        %v2261 = vpop.f32.mrf.mxu0
        %v2262 = vadd.f32 %v2190, %v2261
        %2263 = vmatmul.bf16.gmra.mxu0 %v2226
        %v2264 = vpop.f32.mrf.mxu0
        %v2265 = vadd.f32 %v2190, %v2264
        %v2266 = vpop.f32.mrf.mxu0
        %v2267 = vadd.f32 %v2190, %v2266
        %2268 = vmatmul.bf16.gmra.mxu0 %v2229
        %v2269 = vpop.f32.mrf.mxu0
        %v2270 = vadd.f32 %v2190, %v2269
        %v2271 = vpop.f32.mrf.mxu0
        %v2272 = vadd.f32 %v2190, %v2271
        %2273 = vmatmul.bf16.gmra.mxu0 %v2232
        %v2274 = vpop.f32.mrf.mxu0
        %v2275 = vadd.f32 %v2190, %v2274
        %v2276 = vpop.f32.mrf.mxu0
        %v2277 = vadd.f32 %v2190, %v2276
        %2278 = vmatmul.bf16.gmra.mxu0 %v2235
        %v2279 = vpop.f32.mrf.mxu0
        %v2280 = vadd.f32 %v2190, %v2279
        %v2281 = vpop.f32.mrf.mxu0
        %v2282 = vadd.f32 %v2190, %v2281
        %2283 = vmatmul.bf16.gmra.mxu0 %v2238
        %v2284 = vpop.f32.mrf.mxu0
        %v2285 = vadd.f32 %v2190, %v2284
        %v2286 = vpop.f32.mrf.mxu0
        %v2287 = vadd.f32 %v2190, %v2286
        %2288 = vdwg.mxu0
        %v2289 = vmax.f32 %v2250, 0.0
        %v2290 = vmax.f32 %v2252, 0.0
        %v2291 = vmax.f32 %v2255, 0.0
        %v2292 = vmax.f32 %v2257, 0.0
        %v2293 = vmax.f32 %v2260, 0.0
        %v2294 = vmax.f32 %v2262, 0.0
        %v2295 = vmax.f32 %v2265, 0.0
        %v2296 = vmax.f32 %v2267, 0.0
        %v2297 = vmax.f32 %v2270, 0.0
        %v2298 = vmax.f32 %v2272, 0.0
        %v2299 = vmax.f32 %v2275, 0.0
        %v2300 = vmax.f32 %v2277, 0.0
        %v2301 = vmax.f32 %v2280, 0.0
        %v2302 = vmax.f32 %v2282, 0.0
        %v2303 = vmax.f32 %v2285, 0.0
        %v2304 = vmax.f32 %v2287, 0.0
        %v2305 = vsel %vm1052, %v2289, 0.0
        %v2306 = vrot.slane %v2305, 4
        %v2307 = vadd.f32 %v2305, %v2306
        %v2308 = vrot.slane %v2307, 2
        %v2309 = vadd.f32 %v2307, %v2308
        %v2310 = vrot.slane %v2309, 1
        %v2311 = vadd.f32 %v2309, %v2310
        %v2312 = vsel %vm1052, %v2290, 0.0
        %v2313 = vrot.slane %v2312, 4
        %v2314 = vadd.f32 %v2312, %v2313
        %v2315 = vrot.slane %v2314, 2
        %v2316 = vadd.f32 %v2314, %v2315
        %v2317 = vrot.slane %v2316, 1
        %v2318 = vadd.f32 %v2316, %v2317
        %v2319 = vsel %vm1052, %v2291, 0.0
        %v2320 = vrot.slane %v2319, 4
        %v2321 = vadd.f32 %v2319, %v2320
        %v2322 = vrot.slane %v2321, 2
        %v2323 = vadd.f32 %v2321, %v2322
        %v2324 = vrot.slane %v2323, 1
        %v2325 = vadd.f32 %v2323, %v2324
        %v2326 = vsel %vm1052, %v2292, 0.0
        %v2327 = vrot.slane %v2326, 4
        %v2328 = vadd.f32 %v2326, %v2327
        %v2329 = vrot.slane %v2328, 2
        %v2330 = vadd.f32 %v2328, %v2329
        %v2331 = vrot.slane %v2330, 1
        %v2332 = vadd.f32 %v2330, %v2331
        %v2333 = vsel %vm1052, %v2293, 0.0
        %v2334 = vrot.slane %v2333, 4
        %v2335 = vadd.f32 %v2333, %v2334
        %v2336 = vrot.slane %v2335, 2
        %v2337 = vadd.f32 %v2335, %v2336
        %v2338 = vrot.slane %v2337, 1
        %v2339 = vadd.f32 %v2337, %v2338
        %v2340 = vsel %vm1052, %v2294, 0.0
        %v2341 = vrot.slane %v2340, 4
        %v2342 = vadd.f32 %v2340, %v2341
        %v2343 = vrot.slane %v2342, 2
        %v2344 = vadd.f32 %v2342, %v2343
        %v2345 = vrot.slane %v2344, 1
        %v2346 = vadd.f32 %v2344, %v2345
        %v2347 = vsel %vm1052, %v2295, 0.0
        %v2348 = vrot.slane %v2347, 4
        %v2349 = vadd.f32 %v2347, %v2348
        %v2350 = vrot.slane %v2349, 2
        %v2351 = vadd.f32 %v2349, %v2350
        %v2352 = vrot.slane %v2351, 1
        %v2353 = vadd.f32 %v2351, %v2352
        %v2354 = vsel %vm1052, %v2296, 0.0
        %v2355 = vrot.slane %v2354, 4
        %v2356 = vadd.f32 %v2354, %v2355
        %v2357 = vrot.slane %v2356, 2
        %v2358 = vadd.f32 %v2356, %v2357
        %v2359 = vrot.slane %v2358, 1
        %v2360 = vadd.f32 %v2358, %v2359
        %v2361 = vsel %vm1052, %v2297, 0.0
        %v2362 = vrot.slane %v2361, 4
        %v2363 = vadd.f32 %v2361, %v2362
        %v2364 = vrot.slane %v2363, 2
        %v2365 = vadd.f32 %v2363, %v2364
        %v2366 = vrot.slane %v2365, 1
        %v2367 = vadd.f32 %v2365, %v2366
        %v2368 = vsel %vm1052, %v2298, 0.0
        %v2369 = vrot.slane %v2368, 4
        %v2370 = vadd.f32 %v2368, %v2369
        %v2371 = vrot.slane %v2370, 2
        %v2372 = vadd.f32 %v2370, %v2371
        %v2373 = vrot.slane %v2372, 1
        %v2374 = vadd.f32 %v2372, %v2373
        %v2375 = vsel %vm1052, %v2299, 0.0
        %v2376 = vrot.slane %v2375, 4
        %v2377 = vadd.f32 %v2375, %v2376
        %v2378 = vrot.slane %v2377, 2
        %v2379 = vadd.f32 %v2377, %v2378
        %v2380 = vrot.slane %v2379, 1
        %v2381 = vadd.f32 %v2379, %v2380
        %v2382 = vsel %vm1052, %v2300, 0.0
        %v2383 = vrot.slane %v2382, 4
        %v2384 = vadd.f32 %v2382, %v2383
        %v2385 = vrot.slane %v2384, 2
        %v2386 = vadd.f32 %v2384, %v2385
        %v2387 = vrot.slane %v2386, 1
        %v2388 = vadd.f32 %v2386, %v2387
        %v2389 = vsel %vm1052, %v2301, 0.0
        %v2390 = vrot.slane %v2389, 4
        %v2391 = vadd.f32 %v2389, %v2390
        %v2392 = vrot.slane %v2391, 2
        %v2393 = vadd.f32 %v2391, %v2392
        %v2394 = vrot.slane %v2393, 1
        %v2395 = vadd.f32 %v2393, %v2394
        %v2396 = vsel %vm1052, %v2302, 0.0
        %v2397 = vrot.slane %v2396, 4
        %v2398 = vadd.f32 %v2396, %v2397
        %v2399 = vrot.slane %v2398, 2
        %v2400 = vadd.f32 %v2398, %v2399
        %v2401 = vrot.slane %v2400, 1
        %v2402 = vadd.f32 %v2400, %v2401
        %v2403 = vsel %vm1052, %v2303, 0.0
        %v2404 = vrot.slane %v2403, 4
        %v2405 = vadd.f32 %v2403, %v2404
        %v2406 = vrot.slane %v2405, 2
        %v2407 = vadd.f32 %v2405, %v2406
        %v2408 = vrot.slane %v2407, 1
        %v2409 = vadd.f32 %v2407, %v2408
        %v2410 = vsel %vm1052, %v2304, 0.0
        %v2411 = vrot.slane %v2410, 4
        %v2412 = vadd.f32 %v2410, %v2411
        %v2413 = vrot.slane %v2412, 2
        %v2414 = vadd.f32 %v2412, %v2413
        %v2415 = vrot.slane %v2414, 1
        %v2416 = vadd.f32 %v2414, %v2415
        %v2417 = vpack.c.bf16 %v2311, %v2311
        %v2418 = vpack.c.bf16 %v2318, %v2318
        %v2419 = vpack.c.bf16 %v2325, %v2325
        %v2420 = vpack.c.bf16 %v2332, %v2332
        %v2421 = vpack.c.bf16 %v2339, %v2339
        %v2422 = vpack.c.bf16 %v2346, %v2346
        %v2423 = vpack.c.bf16 %v2353, %v2353
        %v2424 = vpack.c.bf16 %v2360, %v2360
        %v2425 = vpack.c.bf16 %v2367, %v2367
        %v2426 = vpack.c.bf16 %v2374, %v2374
        %v2427 = vpack.c.bf16 %v2381, %v2381
        %v2428 = vpack.c.bf16 %v2388, %v2388
        %v2429 = vpack.c.bf16 %v2395, %v2395
        %v2430 = vpack.c.bf16 %v2402, %v2402
        %v2431 = vpack.c.bf16 %v2409, %v2409
        %v2432 = vpack.c.bf16 %v2416, %v2416
        %v2441 = vunpack.c.l.b16 %v2425
        %v2442 = vunpack.c.l.b16 %v2426
        %v2443 = vunpack.c.l.b16 %v2427
        %v2444 = vunpack.c.l.b16 %v2428
        %v2445 = vunpack.c.l.b16 %v2429
        %v2446 = vunpack.c.l.b16 %v2430
        %v2447 = vunpack.c.l.b16 %v2431
        %v2448 = vunpack.c.l.b16 %v2432
        %vm2449 = vcmask 1041409
        %v2450 = vsel %vm2449, %v2442, %v2441
        %vm2451 = vcmask 1042434
        %v2452 = vsel %vm2451, %v2443, %v2450
        %vm2453 = vcmask 1043459
        %v2454 = vsel %vm2453, %v2444, %v2452
        %vm2455 = vcmask 1044484
        %v2456 = vsel %vm2455, %v2445, %v2454
        %vm2457 = vcmask 1045509
        %v2458 = vsel %vm2457, %v2446, %v2456
        %vm2459 = vcmask 1046534
        %v2460 = vsel %vm2459, %v2447, %v2458
        %vm2461 = vcmask 1047559
        %v2462 = vsel %vm2461, %v2448, %v2460
        %v2463 = vpack.c.b16 %v2462, %v2462
        %v2472 = vunpack.c.l.b16 %v845
        %v2473 = vunpack.c.l.b16 %v846
        %v2474 = vunpack.c.l.b16 %v847
        %v2475 = vunpack.c.l.b16 %v848
        %v2476 = vunpack.c.l.b16 %v849
        %v2477 = vunpack.c.l.b16 %v850
        %v2478 = vunpack.c.l.b16 %v851
        %v2479 = vunpack.c.l.b16 %v852
        %v2480 = vpack.c.b16 %v2473, %v2472
        %v2481 = vpack.c.b16 %v2475, %v2474
        %v2482 = vpack.c.b16 %v2477, %v2476
        %v2483 = vpack.c.b16 %v2479, %v2478
        %v2489 = vsel %vm1052, %v2463, 0
        %2491 = vmatpush.bf16.msra.mxu0 0
        %2492 = vmatpush.bf16.msra.mxu0 0
        %2493 = vmatpush.bf16.msra.mxu0 0
        %2494 = vmatpush.bf16.msra.mxu0 0
        %2495 = vmatpush.bf16.msra.mxu0 %v2483
        %2496 = vmatpush.bf16.msra.mxu0 %v2482
        %2497 = vmatpush.bf16.msra.mxu0 %v2481
        %2498 = vmatpush.bf16.msra.mxu0 %v2480
        %2499 = vmatmul.bf16.gmra.mxu0 %v2489
        %v2500 = vpop.f32.mrf.mxu0
        %v2501 = vadd.f32 0.0, %v2500
        %v2502 = vpop.f32.mrf.mxu0
        %2503 = vdwg.mxu0
        %v2512 = vunpack.c.l.b16 %v2417
        %v2513 = vunpack.c.l.b16 %v2418
        %v2514 = vunpack.c.l.b16 %v2419
        %v2515 = vunpack.c.l.b16 %v2420
        %v2516 = vunpack.c.l.b16 %v2421
        %v2517 = vunpack.c.l.b16 %v2422
        %v2518 = vunpack.c.l.b16 %v2423
        %v2519 = vunpack.c.l.b16 %v2424
        %v2520 = vsel %vm2449, %v2513, %v2512
        %v2521 = vsel %vm2451, %v2514, %v2520
        %v2522 = vsel %vm2453, %v2515, %v2521
        %v2523 = vsel %vm2455, %v2516, %v2522
        %v2524 = vsel %vm2457, %v2517, %v2523
        %v2525 = vsel %vm2459, %v2518, %v2524
        %v2526 = vsel %vm2461, %v2519, %v2525
        %v2527 = vpack.c.b16 %v2526, %v2526
        %v2536 = vunpack.c.l.b16 %v837
        %v2537 = vunpack.c.l.b16 %v838
        %v2538 = vunpack.c.l.b16 %v839
        %v2539 = vunpack.c.l.b16 %v840
        %v2540 = vunpack.c.l.b16 %v841
        %v2541 = vunpack.c.l.b16 %v842
        %v2542 = vunpack.c.l.b16 %v843
        %v2543 = vunpack.c.l.b16 %v844
        %v2544 = vpack.c.b16 %v2537, %v2536
        %v2545 = vpack.c.b16 %v2539, %v2538
        %v2546 = vpack.c.b16 %v2541, %v2540
        %v2547 = vpack.c.b16 %v2543, %v2542
        %v2553 = vsel %vm1052, %v2527, 0
        %2555 = vmatpush.bf16.msra.mxu0 0
        %2556 = vmatpush.bf16.msra.mxu0 0
        %2557 = vmatpush.bf16.msra.mxu0 0
        %2558 = vmatpush.bf16.msra.mxu0 0
        %2559 = vmatpush.bf16.msra.mxu0 %v2547
        %2560 = vmatpush.bf16.msra.mxu0 %v2546
        %2561 = vmatpush.bf16.msra.mxu0 %v2545
        %2562 = vmatpush.bf16.msra.mxu0 %v2544
        %2563 = vmatmul.bf16.gmra.mxu0 %v2553
        %v2564 = vpop.f32.mrf.mxu0
        %v2565 = vadd.f32 %v2501, %v2564
        %v2566 = vpop.f32.mrf.mxu0
        %2567 = vdwg.mxu0
        %v2569 = vperm.slane %v853, 0
        %v2571 = vadd.f32 %v2565, %v2569
        %v2572 = vmax.f32 %v2571, 0.0
        %v2573 = vpack.c.bf16 %v2572, %v2572
        %v2575 = vperm.slane %v862, 0
        %v2585 = vunpack.c.l.b16 %v854
        %v2586 = vunpack.c.l.b16 %v855
        %v2587 = vunpack.c.l.b16 %v856
        %v2588 = vunpack.c.l.b16 %v857
        %v2589 = vunpack.c.l.b16 %v858
        %v2590 = vunpack.c.l.b16 %v859
        %v2591 = vunpack.c.l.b16 %v860
        %v2592 = vunpack.c.l.b16 %v861
        %v2593 = vpack.c.b16 %v2586, %v2585
        %v2594 = vpack.c.b16 %v2588, %v2587
        %v2595 = vpack.c.b16 %v2590, %v2589
        %v2596 = vpack.c.b16 %v2592, %v2591
        %v2602 = vsel %vm1052, %v2573, 0
        %2604 = vmatpush.bf16.msra.mxu0 0
        %2605 = vmatpush.bf16.msra.mxu0 0
        %2606 = vmatpush.bf16.msra.mxu0 0
        %2607 = vmatpush.bf16.msra.mxu0 0
        %2608 = vmatpush.bf16.msra.mxu0 %v2596
        %2609 = vmatpush.bf16.msra.mxu0 %v2595
        %2610 = vmatpush.bf16.msra.mxu0 %v2594
        %2611 = vmatpush.bf16.msra.mxu0 %v2593
        %2612 = vmatmul.bf16.gmra.mxu0 %v2602
        %v2613 = vpop.f32.mrf.mxu0
        %v2614 = vadd.f32 %v2575, %v2613
        %v2615 = vpop.f32.mrf.mxu0
        %2616 = vdwg.mxu0
        %v2617 = vmax.f32 %v2614, 0.0
        %v2618 = vpack.c.bf16 %v2617, %v2617
        %v2620 = vperm.slane %v871, 0
        %v2630 = vunpack.c.l.b16 %v863
        %v2631 = vunpack.c.l.b16 %v864
        %v2632 = vunpack.c.l.b16 %v865
        %v2633 = vunpack.c.l.b16 %v866
        %v2634 = vunpack.c.l.b16 %v867
        %v2635 = vunpack.c.l.b16 %v868
        %v2636 = vunpack.c.l.b16 %v869
        %v2637 = vunpack.c.l.b16 %v870
        %v2638 = vpack.c.b16 %v2631, %v2630
        %v2639 = vpack.c.b16 %v2633, %v2632
        %v2640 = vpack.c.b16 %v2635, %v2634
        %v2641 = vpack.c.b16 %v2637, %v2636
        %v2647 = vsel %vm1052, %v2618, 0
        %2649 = vmatpush.bf16.msra.mxu0 0
        %2650 = vmatpush.bf16.msra.mxu0 0
        %2651 = vmatpush.bf16.msra.mxu0 0
        %2652 = vmatpush.bf16.msra.mxu0 0
        %2653 = vmatpush.bf16.msra.mxu0 %v2641
        %2654 = vmatpush.bf16.msra.mxu0 %v2640
        %2655 = vmatpush.bf16.msra.mxu0 %v2639
        %2656 = vmatpush.bf16.msra.mxu0 %v2638
        %2657 = vmatmul.bf16.gmra.mxu0 %v2647
        %v2658 = vpop.f32.mrf.mxu0
        %v2659 = vadd.f32 %v2620, %v2658
        %v2660 = vpop.f32.mrf.mxu0
        %2661 = vdwg.mxu0
        %2662 = vst [vmem:[%s785] sm:$0xff] %v2659
        %s2663 = sand.u32 %s438, 1
        %s2664 = scalar_lea.sflag [#allocation4], %s2663
        %s2665 = sand.u32 %s438, 1
        %s2666 = smul.addr %s2665, 8
        %s2667 = scalar_lea.vmem [#allocation20], %s2666
        // Predicated region
        $region137: #{tpu_custom_call.1} parent=91 // pred_check
          %p2668 = pneg %p448
        $region138: #{tpu_custom_call.1} parent=91 // pred_check_branch
          %2670 = sbr.rel (%p2668) target = $region140
        $region139: #{tpu_custom_call.1} parent=91 // pred_region
          %2672 = vsyncadd %s2664, 0
          %s2673 = smul.addr %s42, 8
          %s2674 = scalar_lea.hbm %s18, %s2673
          %s2676 = sshll.u32 %s2667, 4
          %s2677 = int_to_ptr.vmem [resolvable:$true] %s2676
          %s2678 = sshll.u32 %s2674, 4
          %s2679 = int_to_ptr.hbm [resolvable:$true] %s2678
          %2681 = dma.vmem_to_hbm [thread:$0]  %s2677, 128, %s2679, %s2664
        $region140: #{tpu_custom_call.1} parent=91 // pred_fallthru
          _
      $region92: #{tpu_custom_call.1} parent=5 // pred_fallthru
        _
      %p2682 = scmp.le.s32.totalorder 2, %s37
      // Predicated region
      $region141: #{tpu_custom_call.1} parent=5 // pred_check
        %p2683 = pneg %p2682
      $region142: #{tpu_custom_call.1} parent=5 // pred_check_branch
        %2685 = sbr.rel (%p2683) target = $region144
      $region143: #{tpu_custom_call.1} parent=5 // pred_region
        %s2686 = ssub.s32 %s37, 2
        // Predicated region
        $region145: #{tpu_custom_call.1} parent=143 // pred_check
          %p2687 = pneg %p454
        $region146: #{tpu_custom_call.1} parent=143 // pred_check_branch
          %2689 = sbr.rel (%p2687) target = $region148
        $region147: #{tpu_custom_call.1} parent=143 // pred_region
          %s2690 = sand.u32 %s439, 1
          %s2691 = scalar_lea.sflag [#allocation4], %s2690
          %s2692 = sand.u32 %s439, 1
          %s2693 = smul.addr %s2692, 8
          %s2694 = scalar_lea.vmem [#allocation20], %s2693
          %2696 = dma.done %s2691, 128
        $region148: #{tpu_custom_call.1} parent=143 // pred_fallthru
          _
      $region144: #{tpu_custom_call.1} parent=5 // pred_fallthru
        _
    $region6: #{tpu_custom_call.1} parent=1 // loop_footer
      %s41 = sadd.s32 1, %s37
    $region7: #{tpu_custom_call.1} parent=1 // loop_footer_branch
      %36 = sbr.rel target = $region3
    $region8: #{tpu_custom_call.1} parent=1 // loop_exit
      _
    %2697 = vsyncpa [#allocation3], 1
    %s2698 = scalar_lea.sflag [#allocation3], 1
    %2699 = vsyncpa %s2698, 1
    %2700 = vsyncpa [#allocation6], 1
    %s2701 = scalar_lea.sflag [#allocation6], 1
    %2702 = vsyncpa %s2701, 1
    %2703 = vsyncpa [#allocation9], 1
    %2704 = vsyncpa [#allocation12], 1
    %2705 = vsyncpa [#allocation15], 1
    %2706 = vsyncpa [#allocation18], 1
    %2707 = vsyncpa [#allocation4], 1
    %s2708 = scalar_lea.sflag [#allocation4], 1
    %2709 = vsyncpa %s2708, 1

</llo_original>
